<compile_context>
chip_gen: v7x
topology: tpu7x:2x2x1
jax: 0.10.0
libtpu: 0.0.40
codegen_flags: <defaults>
</compile_context>

<pallas_src>
import functools

import jax
import jax.numpy as jnp
from jax.experimental import pallas as pl
from jax.experimental.pallas import tpu as pltpu


def _round_up(x, m):
    return ((x + m - 1) // m) * m


def _grand_kernel(k, n_k_tiles, n_pad, tm, tk, inv_kp1,
                  a_ref, z0_ref, x0_ref, norm_ref,
                  w1_ref, b1_ref, w2_ref, b2_ref,
                  out_ref,
                  z_buf, y_buf, acc_ref):
    """Fused GRANDConv (k hops) + 2-layer MLP.

    grid = (hop, row_tile, col_tile); col_tile is the contraction axis of one
    propagation step.  z_buf is a flat ping-pong buffer (2*n_pad rows) holding
    z_h = D^{-1/2} x_h in bf16 (slot h%2); y_buf accumulates sum_h x_h in f32.
    """
    h = pl.program_id(0)
    m = pl.program_id(1)
    kk = pl.program_id(2)

    # One-time init of the resident state (very first grid step).
    @pl.when((h == 0) & (m == 0) & (kk == 0))
    def _init():
        z_buf[pl.ds(0, n_pad), :] = z0_ref[...]   # z_0 = D^{-1/2} x
        y_buf[...] = x0_ref[...]                  # y starts at x_0

    # Zero the per-(hop, row-tile) f32 accumulator for A^T z_h.
    @pl.when(kk == 0)
    def _zero_acc():
        acc_ref[...] = jnp.zeros_like(acc_ref)

    slot = h % 2
    src = pl.multiple_of(slot * n_pad + kk * tk, tk)
    z_blk = z_buf[pl.ds(src, tk), :]                       # (tk, F) bf16
    acc_ref[...] += jnp.dot(a_ref[...], z_blk,             # bf16 MXU, f32 acc
                            preferred_element_type=jnp.float32)

    @pl.when(kk == n_k_tiles - 1)
    def _finalize():
        nrm = norm_ref[...]                                # (tm, 1) f32
        xh = nrm * acc_ref[...]                            # x_{h+1} rows (f32)
        row = pl.multiple_of(m * tm, tm)
        y_buf[pl.ds(row, tm), :] += xh
        dst = pl.multiple_of((1 - slot) * n_pad + row, tm)
        z_buf[pl.ds(dst, tm), :] = (nrm * xh).astype(z_buf.dtype)

        # Last hop: run the MLP on this row tile, emit lane-dense output.
        @pl.when(h == k - 1)
        def _mlp():
            yv = y_buf[pl.ds(row, tm), :] * inv_kp1
            hid = jnp.dot(yv, w1_ref[...],
                          preferred_element_type=jnp.float32) + b1_ref[...]
            hid = jnp.maximum(hid, 0.0)
            o = jnp.dot(hid, w2_ref[...],
                        preferred_element_type=jnp.float32) + b2_ref[...]
            out_ref[...] = o.astype(out_ref.dtype)


@functools.partial(jax.jit, static_argnames=("k", "tile"))
def grand_forward(adj, x, w1, b1, w2, b2, *, k=3, tile=256):
    """Eval-mode GRAND forward.

    adj : [N, N] dense adjacency (A[u, v] != 0  <=>  edge u -> v).
    x   : [N, F] node features.
    w1/b1/w2/b2 : 2-layer MLP parameters ([F,H], [H], [H,O], [O]).
    """
    assert k >= 1
    assert tile % 128 == 0
    n, f_in = x.shape
    hidden = w1.shape[1]
    f_out = w2.shape[1]

    # Lane-dense padded sizes (last dims -> multiples of 128).
    f_pad = _round_up(f_in, 128)
    h_pad = _round_up(hidden, 128)
    o_pad = _round_up(f_out, 128)
    tm = tk = min(tile, _round_up(n, 128))
    n_pad = _round_up(n, tm)
    n_m = n_pad // tm
    n_k = n_pad // tk

    # ---- cheap XLA glue: binary A^T (bf16), in-degree norm, padded operands.
    a_t_bool = (adj.T != 0)                                 # [N,N], row = dst
    degs = jnp.sum(a_t_bool, axis=1).astype(jnp.float32)    # in-degrees
    norm = jax.lax.rsqrt(jnp.maximum(degs, 1.0))            # clamp(min=1)^-1/2
    a_t = jnp.pad(a_t_bool.astype(jnp.bfloat16),
                  ((0, n_pad - n), (0, n_pad - n)))
    x32 = x.astype(jnp.float32)
    x_p = jnp.pad(x32, ((0, n_pad - n), (0, f_pad - f_in)))
    z0_p = jnp.pad((norm[:, None] * x32).astype(jnp.bfloat16),
                   ((0, n_pad - n), (0, f_pad - f_in)))
    norm_p = jnp.pad(norm, (0, n_pad - n), constant_values=1.0)[:, None]
    w1_p = jnp.pad(w1.astype(jnp.float32),
                   ((0, f_pad - f_in), (0, h_pad - hidden)))
    b1_p = jnp.pad(b1.astype(jnp.float32), (0, h_pad - hidden))[None, :]
    w2_p = jnp.pad(w2.astype(jnp.float32),
                   ((0, h_pad - hidden), (0, o_pad - f_out)))
    b2_p = jnp.pad(b2.astype(jnp.float32), (0, o_pad - f_out))[None, :]

    const = lambda shape: pl.BlockSpec(shape, lambda h_, m_, k_: (0, 0))
    in_specs = [
        pl.BlockSpec((tm, tk), lambda h_, m_, k_: (m_, k_)),    # A^T tiles
        const((n_pad, f_pad)),                                  # z0 (bf16)
        const((n_pad, f_pad)),                                  # x0 (f32)
        pl.BlockSpec((tm, 1), lambda h_, m_, k_: (m_, 0)),      # norm rows
        const((f_pad, h_pad)),                                  # W1
        const((1, h_pad)),                                      # b1
        const((h_pad, o_pad)),                                  # W2
        const((1, o_pad)),                                      # b2
    ]
    out_specs = pl.BlockSpec((tm, o_pad), lambda h_, m_, k_: (m_, 0))
    scratch_shapes = [
        pltpu.VMEM((2 * n_pad, f_pad), jnp.bfloat16),   # z ping-pong
        pltpu.VMEM((n_pad, f_pad), jnp.float32),        # y accumulator
        pltpu.VMEM((tm, f_pad), jnp.float32),           # per-tile matmul acc
    ]

    # Scoped VMEM sized to resident state + double-buffered streams.
    vmem_need = (
        2 * tm * tk * 2                                  # A^T tile (x2 buf)
        + 2 * n_pad * f_pad * (2 + 4)                    # z0 (bf16) + x0 (f32)
        + 2 * tm * 128 * 4                               # norm block (padded)
        + 2 * (f_pad * h_pad + h_pad * o_pad + h_pad + o_pad) * 4
        + 2 * tm * o_pad * 4                             # output block
        + 2 * n_pad * f_pad * 2                          # z scratch
        + n_pad * f_pad * 4                              # y scratch
        + tm * f_pad * 4                                 # acc scratch
    )
    vmem_limit = max(32 * 1024 * 1024,
                     min(100 * 1024 * 1024, int(vmem_need * 1.3)))

    flops = (2 * k * n_pad * n_pad * f_pad
             + 2 * n_pad * (f_pad * h_pad + h_pad * o_pad))
    bytes_accessed = (k * n_pad * n_pad * 2
                      + n_pad * f_pad * (2 + 4)
                      + (f_pad * h_pad + h_pad * o_pad) * 4
                      + k * n_pad * o_pad * 4)

    out_pad = pl.pallas_call(
        functools.partial(_grand_kernel, k, n_k, n_pad, tm, tk, 1.0 / (k + 1)),
        out_shape=jax.ShapeDtypeStruct((n_pad, o_pad), jnp.float32),
        grid_spec=pltpu.PrefetchScalarGridSpec(
            num_scalar_prefetch=0,
            grid=(k, n_m, n_k),
            in_specs=in_specs,
            out_specs=out_specs,
            scratch_shapes=scratch_shapes),
        compiler_params=pltpu.CompilerParams(
            # Row axis stays "arbitrary": the cross-hop z/y state lives in
            # per-core VMEM scratch, so it cannot be sharded across cores.
            dimension_semantics=("arbitrary", "arbitrary", "arbitrary"),
            vmem_limit_bytes=vmem_limit),
        cost_estimate=pl.CostEstimate(flops=flops, transcendentals=0,
                                      bytes_accessed=bytes_accessed),
    )(a_t, z0_p, x_p, norm_p, w1_p, b1_p, w2_p, b2_p)

    return out_pad[:n, :f_out]


def _reference(adj, x, w1, b1, w2, b2, k):
    """Pure-JAX f32 reference of the eval forward."""
    a_bin = (adj != 0).astype(jnp.float32)
    norm = jax.lax.rsqrt(jnp.maximum(jnp.sum(a_bin, axis=0), 1.0))
    adj_hat = norm[:, None] * a_bin.T * norm[None, :]
    y = x
    h = x
    for _ in range(k):
        h = adj_hat @ h
        y = y + h
    y = y / (k + 1)
    return jnp.maximum(y @ w1 + b1, 0.0) @ w2 + b2


if __name__ == "__main__":
    # Small shapes consistent with the module: N nodes, in/hidden/out features.
    N, in_features, hidden_features, out_features, K = 256, 16, 32, 8, 3

    key = jax.random.PRNGKey(0)
    k_adj, k_x, k_w1, k_b1, k_w2, k_b2 = jax.random.split(key, 6)

    # Random binary directed adjacency (scipy-sparse analogue).
    adj = (jax.random.uniform(k_adj, (N, N)) < 0.2).astype(jnp.float32)
    x = jax.random.normal(k_x, (N, in_features), dtype=jnp.float32)

    # PyTorch Linear-style uniform init.
    bound1 = 1.0 / (in_features ** 0.5)
    w1 = jax.random.uniform(k_w1, (in_features, hidden_features),
                            minval=-bound1, maxval=bound1, dtype=jnp.float32)
    b1 = jax.random.uniform(k_b1, (hidden_features,),
                            minval=-bound1, maxval=bound1, dtype=jnp.float32)
    bound2 = 1.0 / (hidden_features ** 0.5)
    w2 = jax.random.uniform(k_w2, (hidden_features, out_features),
                            minval=-bound2, maxval=bound2, dtype=jnp.float32)
    b2 = jax.random.uniform(k_b2, (out_features,),
                            minval=-bound2, maxval=bound2, dtype=jnp.float32)

    # tile=128 so the tiny demo still exercises multiple row/col tiles.
    out = grand_forward(adj, x, w1, b1, w2, b2, k=K, tile=128)
    out = jax.block_until_ready(out)

    ref = _reference(adj, x, w1, b1, w2, b2, K)
    assert out.shape == (N, out_features)
    # bf16 propagation with f32 accumulation -> modestly relaxed tolerance.
    assert jnp.allclose(out, ref, atol=2e-2, rtol=2e-2), "mismatch vs reference"

    # TODO(synk): training-mode path (S Bernoulli node-dropout augmentations
    # + log_softmax consistency outputs) not implemented; eval path only.
    print("KERNEL_OK")
</pallas_src>

<mosaic_0001>
module attributes {stable_mosaic.version = 11 : i64} {
  func.func @_grand_kernel(%arg0: i32, %arg1: i32, %arg2: i32, %arg3: memref<128x128xbf16, #tpu.memory_space<vmem>>, %arg4: memref<256x128xbf16, #tpu.memory_space<vmem>>, %arg5: memref<256x128xf32, #tpu.memory_space<vmem>>, %arg6: memref<128x1xf32, #tpu.memory_space<vmem>>, %arg7: memref<128x128xf32, #tpu.memory_space<vmem>>, %arg8: memref<1x128xf32, #tpu.memory_space<vmem>>, %arg9: memref<128x128xf32, #tpu.memory_space<vmem>>, %arg10: memref<1x128xf32, #tpu.memory_space<vmem>>, %arg11: memref<128x128xf32, #tpu.memory_space<vmem>>, %arg12: memref<512x128xbf16, #tpu.memory_space<vmem>>, %arg13: memref<256x128xf32, #tpu.memory_space<vmem>>, %arg14: memref<128x128xf32, #tpu.memory_space<vmem>>) attributes {dimension_semantics = [#tpu.dimension_semantics<arbitrary>, #tpu.dimension_semantics<arbitrary>, #tpu.dimension_semantics<arbitrary>], iteration_bounds = array<i64: 3, 2, 2>, scalar_prefetch = 0 : i64, scratch_operands = 3 : i64, tpu.core_type = #tpu.core_type<tc>, window_params = [{transform_indices = @transform_0, window_bounds = array<i64: 128, 128>}, {pipeline_mode = #tpu.pipeline_mode<synchronous>, transform_indices = @transform_1, window_bounds = array<i64: 256, 128>}, {pipeline_mode = #tpu.pipeline_mode<synchronous>, transform_indices = @transform_2, window_bounds = array<i64: 256, 128>}, {transform_indices = @transform_3, window_bounds = array<i64: 128, 1>}, {pipeline_mode = #tpu.pipeline_mode<synchronous>, transform_indices = @transform_4, window_bounds = array<i64: 128, 128>}, {pipeline_mode = #tpu.pipeline_mode<synchronous>, transform_indices = @transform_5, window_bounds = array<i64: 1, 128>}, {pipeline_mode = #tpu.pipeline_mode<synchronous>, transform_indices = @transform_6, window_bounds = array<i64: 128, 128>}, {pipeline_mode = #tpu.pipeline_mode<synchronous>, transform_indices = @transform_7, window_bounds = array<i64: 1, 128>}, {transform_indices = @transform_8, window_bounds = array<i64: 128, 128>}]} {
    %c0_i32 = arith.constant 0 : i32
    %0 = arith.cmpi eq, %arg0, %c0_i32 : i32
    %c0_i32_0 = arith.constant 0 : i32
    %1 = arith.cmpi eq, %arg1, %c0_i32_0 : i32
    %2 = arith.andi %0, %1 : i1
    %c0_i32_1 = arith.constant 0 : i32
    %3 = arith.cmpi eq, %arg2, %c0_i32_1 : i32
    %4 = arith.andi %2, %3 : i1
    %5 = arith.extui %4 : i1 to i32
    %c0_i32_2 = arith.constant 0 : i32
    %6 = arith.cmpi ne, %5, %c0_i32_2 : i32
    scf.if %6 {
      %c0_17 = arith.constant 0 : index
      %c0_18 = arith.constant 0 : index
      %34 = vector.load %arg4[%c0_17, %c0_18] : memref<256x128xbf16, #tpu.memory_space<vmem>>, vector<256x128xbf16>
      %c0_19 = arith.constant 0 : index
      %c0_20 = arith.constant 0 : index
      %35 = vector.load %arg12[%c0_19, %c0_20] : memref<512x128xbf16, #tpu.memory_space<vmem>>, vector<256x128xbf16>
      tpu.vector_store %arg12[%c0_19, %c0_20], %34 {strides = array<i32>} : memref<512x128xbf16, #tpu.memory_space<vmem>>, vector<256x128xbf16>,
      %c0_21 = arith.constant 0 : index
      %c0_22 = arith.constant 0 : index
      %36 = vector.load %arg5[%c0_21, %c0_22] : memref<256x128xf32, #tpu.memory_space<vmem>>, vector<256x128xf32>
      %c0_23 = arith.constant 0 : index
      %c0_24 = arith.constant 0 : index
      %37 = vector.load %arg13[%c0_23, %c0_24] : memref<256x128xf32, #tpu.memory_space<vmem>>, vector<256x128xf32>
      tpu.vector_store %arg13[%c0_23, %c0_24], %36 {strides = array<i32>} : memref<256x128xf32, #tpu.memory_space<vmem>>, vector<256x128xf32>,
    } else {
    }
    %c0_i32_3 = arith.constant 0 : i32
    %7 = arith.cmpi eq, %arg2, %c0_i32_3 : i32
    %8 = arith.extui %7 : i1 to i32
    %c0_i32_4 = arith.constant 0 : i32
    %9 = arith.cmpi ne, %8, %c0_i32_4 : i32
    scf.if %9 {
      %cst_17 = arith.constant 0.000000e+00 : f32
      %34 = vector.broadcast %cst_17 : f32 to vector<128x128xf32>
      %c0_18 = arith.constant 0 : index
      %c0_19 = arith.constant 0 : index
      %35 = vector.load %arg14[%c0_18, %c0_19] : memref<128x128xf32, #tpu.memory_space<vmem>>, vector<128x128xf32>
      tpu.vector_store %arg14[%c0_18, %c0_19], %34 {strides = array<i32>} : memref<128x128xf32, #tpu.memory_space<vmem>>, vector<128x128xf32>,
    } else {
    }
    %c2_i32 = arith.constant 2 : i32
    %c0_i32_5 = arith.constant 0 : i32
    %10 = arith.cmpi eq, %c2_i32, %c0_i32_5 : i32
    %c1_i32 = arith.constant 1 : i32
    %11 = arith.select %10, %c1_i32, %c2_i32 : i32
    %12 = arith.remsi %arg0, %11 : i32
    %c0_i32_6 = arith.constant 0 : i32
    %13 = arith.cmpi ne, %12, %c0_i32_6 : i32
    %c0_i32_7 = arith.constant 0 : i32
    %14 = arith.cmpi slt, %12, %c0_i32_7 : i32
    %c0_i32_8 = arith.constant 0 : i32
    %15 = arith.cmpi slt, %11, %c0_i32_8 : i32
    %16 = arith.xori %14, %15 : i1
    %17 = arith.andi %16, %13 : i1
    %18 = arith.addi %12, %11 : i32
    %19 = arith.select %17, %18, %12 : i32
    %c256_i32 = arith.constant 256 : i32
    %20 = arith.muli %19, %c256_i32 : i32
    %c128_i32 = arith.constant 128 : i32
    %21 = arith.muli %arg2, %c128_i32 : i32
    %22 = arith.addi %20, %21 : i32
    %23 = tpu.assume_multiple %22, 128 : i32
    %24 = arith.index_cast %23 : i32 to index
    %c0 = arith.constant 0 : index
    %25 = vector.load %arg12[%24, %c0] : memref<512x128xbf16, #tpu.memory_space<vmem>>, vector<128x128xbf16>
    %c0_9 = arith.constant 0 : index
    %c0_10 = arith.constant 0 : index
    %26 = vector.load %arg14[%c0_9, %c0_10] : memref<128x128xf32, #tpu.memory_space<vmem>>, vector<128x128xf32>
    %c0_11 = arith.constant 0 : index
    %c0_12 = arith.constant 0 : index
    %27 = vector.load %arg3[%c0_11, %c0_12] : memref<128x128xbf16, #tpu.memory_space<vmem>>, vector<128x128xbf16>
    %cst = arith.constant dense<0.000000e+00> : vector<128x128xf32>
    %28 = tpu.matmul %27, %25, %cst {dimension_numbers = #tpu.dot_dimension_numbers<[1], [0], [0], [1], [0, 0, 1, 1], [], []>} : vector<128x128xbf16>, vector<128x128xbf16>, vector<128x128xf32> -> vector<128x128xf32>
    %29 = arith.addf %26, %28 : vector<128x128xf32>
    %c0_13 = arith.constant 0 : index
    %c0_14 = arith.constant 0 : index
    %30 = vector.load %arg14[%c0_13, %c0_14] : memref<128x128xf32, #tpu.memory_space<vmem>>, vector<128x128xf32>
    tpu.vector_store %arg14[%c0_13, %c0_14], %29 {strides = array<i32>} : memref<128x128xf32, #tpu.memory_space<vmem>>, vector<128x128xf32>,
    %c1_i32_15 = arith.constant 1 : i32
    %31 = arith.cmpi eq, %arg2, %c1_i32_15 : i32
    %32 = arith.extui %31 : i1 to i32
    %c0_i32_16 = arith.constant 0 : i32
    %33 = arith.cmpi ne, %32, %c0_i32_16 : i32
    scf.if %33 {
      %c0_17 = arith.constant 0 : index
      %c0_18 = arith.constant 0 : index
      %34 = vector.load %arg6[%c0_17, %c0_18] : memref<128x1xf32, #tpu.memory_space<vmem>>, vector<128x1xf32>
      %c0_19 = arith.constant 0 : index
      %c0_20 = arith.constant 0 : index
      %35 = vector.load %arg14[%c0_19, %c0_20] : memref<128x128xf32, #tpu.memory_space<vmem>>, vector<128x128xf32>
      %36 = vector.broadcast %34 : vector<128x1xf32> to vector<128x128xf32>
      %37 = arith.mulf %36, %35 : vector<128x128xf32>
      %c128_i32_21 = arith.constant 128 : i32
      %38 = arith.muli %arg1, %c128_i32_21 : i32
      %39 = tpu.assume_multiple %38, 128 : i32
      %40 = arith.index_cast %39 : i32 to index
      %c0_22 = arith.constant 0 : index
      %41 = vector.load %arg13[%40, %c0_22] : memref<256x128xf32, #tpu.memory_space<vmem>>, vector<128x128xf32>
      %42 = arith.addf %41, %37 : vector<128x128xf32>
      %43 = arith.index_cast %39 : i32 to index
      %c0_23 = arith.constant 0 : index
      %44 = vector.load %arg13[%43, %c0_23] : memref<256x128xf32, #tpu.memory_space<vmem>>, vector<128x128xf32>
      tpu.vector_store %arg13[%43, %c0_23], %42 {strides = array<i32>} : memref<256x128xf32, #tpu.memory_space<vmem>>, vector<128x128xf32>,
      %c1_i32_24 = arith.constant 1 : i32
      %45 = arith.subi %c1_i32_24, %19 : i32
      %c256_i32_25 = arith.constant 256 : i32
      %46 = arith.muli %45, %c256_i32_25 : i32
      %47 = arith.addi %46, %39 : i32
      %48 = tpu.assume_multiple %47, 128 : i32
      %49 = vector.broadcast %34 : vector<128x1xf32> to vector<128x128xf32>
      %50 = arith.mulf %49, %37 : vector<128x128xf32>
      %51 = arith.truncf %50 : vector<128x128xf32> to vector<128x128xbf16>
      %52 = arith.index_cast %48 : i32 to index
      %c0_26 = arith.constant 0 : index
      %53 = vector.load %arg12[%52, %c0_26] : memref<512x128xbf16, #tpu.memory_space<vmem>>, vector<128x128xbf16>
      tpu.vector_store %arg12[%52, %c0_26], %51 {strides = array<i32>} : memref<512x128xbf16, #tpu.memory_space<vmem>>, vector<128x128xbf16>,
      %c2_i32_27 = arith.constant 2 : i32
      %54 = arith.cmpi eq, %arg0, %c2_i32_27 : i32
      %55 = arith.extui %54 : i1 to i32
      %c0_i32_28 = arith.constant 0 : i32
      %56 = arith.cmpi ne, %55, %c0_i32_28 : i32
      scf.if %56 {
        %57 = arith.index_cast %39 : i32 to index
        %c0_29 = arith.constant 0 : index
        %58 = vector.load %arg13[%57, %c0_29] : memref<256x128xf32, #tpu.memory_space<vmem>>, vector<128x128xf32>
        %cst_30 = arith.constant 2.500000e-01 : f32
        %59 = vector.broadcast %cst_30 : f32 to vector<128x128xf32>
        %60 = arith.mulf %58, %59 : vector<128x128xf32>
        %c0_31 = arith.constant 0 : index
        %c0_32 = arith.constant 0 : index
        %61 = vector.load %arg7[%c0_31, %c0_32] : memref<128x128xf32, #tpu.memory_space<vmem>>, vector<128x128xf32>
        %cst_33 = arith.constant dense<0.000000e+00> : vector<128x128xf32>
        %62 = tpu.matmul %60, %61, %cst_33 {dimension_numbers = #tpu.dot_dimension_numbers<[1], [0], [0], [1], [0, 0, 1, 1], [], []>} : vector<128x128xf32>, vector<128x128xf32>, vector<128x128xf32> -> vector<128x128xf32>
        %c0_34 = arith.constant 0 : index
        %c0_35 = arith.constant 0 : index
        %63 = vector.load %arg8[%c0_34, %c0_35] : memref<1x128xf32, #tpu.memory_space<vmem>>, vector<1x128xf32>
        %64 = vector.broadcast %63 : vector<1x128xf32> to vector<128x128xf32>
        %65 = arith.addf %62, %64 : vector<128x128xf32>
        %cst_36 = arith.constant 0.000000e+00 : f32
        %66 = vector.broadcast %cst_36 : f32 to vector<128x128xf32>
        %67 = arith.maximumf %65, %66 : vector<128x128xf32>
        %c0_37 = arith.constant 0 : index
        %c0_38 = arith.constant 0 : index
        %68 = vector.load %arg9[%c0_37, %c0_38] : memref<128x128xf32, #tpu.memory_space<vmem>>, vector<128x128xf32>
        %cst_39 = arith.constant dense<0.000000e+00> : vector<128x128xf32>
        %69 = tpu.matmul %67, %68, %cst_39 {dimension_numbers = #tpu.dot_dimension_numbers<[1], [0], [0], [1], [0, 0, 1, 1], [], []>} : vector<128x128xf32>, vector<128x128xf32>, vector<128x128xf32> -> vector<128x128xf32>
        %c0_40 = arith.constant 0 : index
        %c0_41 = arith.constant 0 : index
        %70 = vector.load %arg10[%c0_40, %c0_41] : memref<1x128xf32, #tpu.memory_space<vmem>>, vector<1x128xf32>
        %71 = vector.broadcast %70 : vector<1x128xf32> to vector<128x128xf32>
        %72 = arith.addf %69, %71 : vector<128x128xf32>
        %c0_42 = arith.constant 0 : index
        %c0_43 = arith.constant 0 : index
        %73 = vector.load %arg11[%c0_42, %c0_43] : memref<128x128xf32, #tpu.memory_space<vmem>>, vector<128x128xf32>
        tpu.vector_store %arg11[%c0_42, %c0_43], %72 {strides = array<i32>} : memref<128x128xf32, #tpu.memory_space<vmem>>, vector<128x128xf32>,
      } else {
      }
    } else {
    }
    return
  }
  func.func @transform_0(%arg0: i32, %arg1: i32, %arg2: i32) -> (i32, i32) {
    %c0_i32 = arith.constant 0 : i32
    return %arg1, %arg2 : i32, i32
  }
  func.func @transform_1(%arg0: i32, %arg1: i32, %arg2: i32) -> (i32, i32) {
    %c0_i32 = arith.constant 0 : i32
    %c0_i32_0 = arith.constant 0 : i32
    %c0_i32_1 = arith.constant 0 : i32
    return %c0_i32, %c0_i32_0 : i32, i32
  }
  func.func @transform_2(%arg0: i32, %arg1: i32, %arg2: i32) -> (i32, i32) {
    %c0_i32 = arith.constant 0 : i32
    %c0_i32_0 = arith.constant 0 : i32
    %c0_i32_1 = arith.constant 0 : i32
    return %c0_i32, %c0_i32_0 : i32, i32
  }
  func.func @transform_3(%arg0: i32, %arg1: i32, %arg2: i32) -> (i32, i32) {
    %c0_i32 = arith.constant 0 : i32
    %c0_i32_0 = arith.constant 0 : i32
    return %arg1, %c0_i32 : i32, i32
  }
  func.func @transform_4(%arg0: i32, %arg1: i32, %arg2: i32) -> (i32, i32) {
    %c0_i32 = arith.constant 0 : i32
    %c0_i32_0 = arith.constant 0 : i32
    %c0_i32_1 = arith.constant 0 : i32
    return %c0_i32, %c0_i32_0 : i32, i32
  }
  func.func @transform_5(%arg0: i32, %arg1: i32, %arg2: i32) -> (i32, i32) {
    %c0_i32 = arith.constant 0 : i32
    %c0_i32_0 = arith.constant 0 : i32
    %c0_i32_1 = arith.constant 0 : i32
    return %c0_i32, %c0_i32_0 : i32, i32
  }
  func.func @transform_6(%arg0: i32, %arg1: i32, %arg2: i32) -> (i32, i32) {
    %c0_i32 = arith.constant 0 : i32
    %c0_i32_0 = arith.constant 0 : i32
    %c0_i32_1 = arith.constant 0 : i32
    return %c0_i32, %c0_i32_0 : i32, i32
  }
  func.func @transform_7(%arg0: i32, %arg1: i32, %arg2: i32) -> (i32, i32) {
    %c0_i32 = arith.constant 0 : i32
    %c0_i32_0 = arith.constant 0 : i32
    %c0_i32_1 = arith.constant 0 : i32
    return %c0_i32, %c0_i32_0 : i32, i32
  }
  func.func @transform_8(%arg0: i32, %arg1: i32, %arg2: i32) -> (i32, i32) {
    %c0_i32 = arith.constant 0 : i32
    %c0_i32_0 = arith.constant 0 : i32
    return %arg1, %c0_i32 : i32, i32
  }
}

</mosaic_0001>

<llo_original>
// kernel: grand_forward.1
$region0: #{grand_forward.1}
  #allocation0 [shape = 'u32[]', space=smem, size = 0x4, offset = 0x4, fixed_abs, tag = 'smem constant byte address 0x4 - core index']
  #allocation1 [shape = 'u32[144,128]{1,0:T(1,128)}', space=vmem, size = 0x12000, scoped, tag = 'internal scratch']
  #allocation2 [shape = 'bf16[512,128]{1,0:T(16,128)(2,1)}', space=vmem, size = 0x20000, scoped, tag = 'scratch operand']
  #allocation3 [shape = 'f32[256,128]{1,0:T(8,128)}', space=vmem, size = 0x20000, scoped, tag = 'scratch operand']
  #allocation4 [shape = 'f32[128,128]{1,0:T(8,128)}', space=vmem, size = 0x10000, scoped, tag = 'scratch operand']
  %s0 = inlined_call_operand.vmem [shape: bf16[256,256], index: 0, kind: input, shape index: {}]
  %s1 = inlined_call_operand.vmem [shape: bf16[256,128], index: 1, kind: input, shape index: {}]
  %s2 = inlined_call_operand.vmem [shape: f32[256,128], index: 2, kind: input, shape index: {}]
  %s3 = inlined_call_operand.vmem [shape: f32[256,1], index: 3, kind: input, shape index: {}]
  %s4 = inlined_call_operand.vmem [shape: f32[128,128], index: 4, kind: input, shape index: {}]
  %s5 = inlined_call_operand.vmem [shape: f32[1,128], index: 5, kind: input, shape index: {}]
  %s6 = inlined_call_operand.vmem [shape: f32[128,128], index: 6, kind: input, shape index: {}]
  %s7 = inlined_call_operand.vmem [shape: f32[1,128], index: 7, kind: input, shape index: {}]
  %s8 = inlined_call_operand.vmem [shape: f32[256,128], index: 8, kind: output, shape index: {}]
  %s9 = sld [smem:[#allocation0]]
  $region122: #{grand_forward.1} parent=0
    _
  %s11 = ssub.s32 1, %s9
  %s12 = scalar_select 0, %s11, %s9
  $region1: #{grand_forward.1} parent=0
    #allocation5 [shape = 'u8[65536]{0}', space=vmem, size = 0x10000, scoped, tag = 'input window, operand 0']
    loop: start=0, step=1, limit=14
    $region2: #{grand_forward.1} parent=1 // loop_pre_header
      _
    $region3: #{grand_forward.1} parent=1 // loop_header
      %s14 = sphi 0, %s18
      %p15 = scmp.ge.s32.totalorder %s14, 14
      %s21 = sphi 0, %s40
      %s22 = sphi 0, %s36
      %s23 = sphi 0, %s32
      %s24 = sphi 0, %s21
      %s25 = sphi 0, %s22
      %s26 = sphi 0, %s23
      %s27 = sphi 0, %s24
      %s28 = sphi 0, %s25
      %s29 = sphi 0, %s26
      %s45 = sphi 0, %s47
      %s48 = sphi 0, %s45
      %s49 = sphi 0, %s48
      %s65 = sphi 0, %s49
      %s69 = sphi 0, %s69
      %s71 = sphi 0, %s69
      %s72 = sphi 0, %s71
      %s86 = sphi 0, %s72
      %s90 = sphi 0, %s90
      %s92 = sphi 0, %s90
      %s93 = sphi 0, %s92
      %s107 = sphi 0, %s93
      %s113 = sphi 0, %s115
      %s116 = sphi 0, %s113
      %s117 = sphi 0, %s116
      %s133 = sphi 0, %s117
      %s137 = sphi 0, %s137
      %s139 = sphi 0, %s137
      %s140 = sphi 0, %s139
      %s154 = sphi 0, %s140
      %s158 = sphi 0, %s158
      %s160 = sphi 0, %s158
      %s161 = sphi 0, %s160
      %s175 = sphi 0, %s161
      %s179 = sphi 0, %s179
      %s181 = sphi 0, %s179
      %s182 = sphi 0, %s181
      %s196 = sphi 0, %s182
      %s200 = sphi 0, %s200
      %s202 = sphi 0, %s200
      %s203 = sphi 0, %s202
      %s217 = sphi 0, %s203
      %s223 = sphi 0, %s225
      %s226 = sphi 0, %s223
      %s227 = sphi 0, %s226
      %s243 = sphi 0, %s227
    $region4: #{grand_forward.1} parent=1 // loop_header_branch
      %17 = sbr.rel (%p15) target = $region8
    $region5: #{grand_forward.1} parent=1 // loop_body
      %s19 = ssub.s32 %s14, 1
      %s20 = ssub.s32 %s14, 2
      %s30 = sadd.s32 1, %s23
      %p31 = scmp.ge.s32.totalorder %s30, 2
      %s32 = scalar_select %p31, 0, %s30
      %s33 = sadd.s32 1, %s22
      %s34 = scalar_select %p31, %s33, %s22
      %p35 = scmp.ge.s32.totalorder %s34, 2
      %s36 = scalar_select %p35, 0, %s34
      %s37 = sadd.s32 1, %s21
      %s38 = scalar_select %p35, %s37, %s21
      %p39 = scmp.ge.s32.totalorder %s38, 3
      %s40 = scalar_select %p39, 0, %s38
      %s41 = ssub.s32 %s22, %s36
      %s42 = ssub.s32 %s23, %s32
      %s43 = sor.u32 %s41, %s42
      %p44 = scmp.eq.s32.totalorder %s43, 0
      %s46 = sadd.s32 %s45, 1
      %s47 = scalar_select %p44, %s45, %s46
      %p50 = pneg %p44
      %p51 = scmp.eq.s32.totalorder %s14, 11
      %p52 = por %p50, %p51
      %p53 = scmp.ne.s32.totalorder %s45, %s48
      %p54 = scmp.eq.s32.totalorder %s14, 0
      %p55 = por %p53, %p54
      %p56 = scmp.ne.s32.totalorder %s45, %s48
      %p57 = scmp.eq.s32.totalorder %s19, 11
      %p58 = por %p56, %p57
      %p59 = scmp.ne.s32.totalorder %s48, %s49
      %p60 = scmp.eq.s32.totalorder %s19, 0
      %p61 = por %p59, %p60
      %p62 = scmp.ne.s32.totalorder %s48, %s49
      %p63 = scmp.eq.s32.totalorder %s20, 11
      %p64 = por %p62, %p63
      %p66 = scmp.ne.s32.totalorder %s49, %s65
      %p67 = scmp.eq.s32.totalorder %s20, 0
      %p68 = por %p66, %p67
      %s70 = sadd.s32 %s69, 1
      %p73 = scmp.eq.s32.totalorder %s14, 11
      %p74 = scmp.ne.s32.totalorder %s69, %s71
      %p75 = scmp.eq.s32.totalorder %s14, 0
      %p76 = por %p74, %p75
      %p77 = scmp.ne.s32.totalorder %s69, %s71
      %p78 = scmp.eq.s32.totalorder %s19, 11
      %p79 = por %p77, %p78
      %p80 = scmp.ne.s32.totalorder %s71, %s72
      %p81 = scmp.eq.s32.totalorder %s19, 0
      %p82 = por %p80, %p81
      %p83 = scmp.ne.s32.totalorder %s71, %s72
      %p84 = scmp.eq.s32.totalorder %s20, 11
      %p85 = por %p83, %p84
      %p87 = scmp.ne.s32.totalorder %s72, %s86
      %p88 = scmp.eq.s32.totalorder %s20, 0
      %p89 = por %p87, %p88
      %s91 = sadd.s32 %s90, 1
      %p94 = scmp.eq.s32.totalorder %s14, 11
      %p95 = scmp.ne.s32.totalorder %s90, %s92
      %p96 = scmp.eq.s32.totalorder %s14, 0
      %p97 = por %p95, %p96
      %p98 = scmp.ne.s32.totalorder %s90, %s92
      %p99 = scmp.eq.s32.totalorder %s19, 11
      %p100 = por %p98, %p99
      %p101 = scmp.ne.s32.totalorder %s92, %s93
      %p102 = scmp.eq.s32.totalorder %s19, 0
      %p103 = por %p101, %p102
      %p104 = scmp.ne.s32.totalorder %s92, %s93
      %p105 = scmp.eq.s32.totalorder %s20, 11
      %p106 = por %p104, %p105
      %p108 = scmp.ne.s32.totalorder %s93, %s107
      %p109 = scmp.eq.s32.totalorder %s20, 0
      %p110 = por %p108, %p109
      %s111 = ssub.s32 %s22, %s36
      %p112 = scmp.eq.s32.totalorder %s111, 0
      %s114 = sadd.s32 %s113, 1
      %s115 = scalar_select %p112, %s113, %s114
      %p118 = pneg %p112
      %p119 = scmp.eq.s32.totalorder %s14, 11
      %p120 = por %p118, %p119
      %p121 = scmp.ne.s32.totalorder %s113, %s116
      %p122 = scmp.eq.s32.totalorder %s14, 0
      %p123 = por %p121, %p122
      %p124 = scmp.ne.s32.totalorder %s113, %s116
      %p125 = scmp.eq.s32.totalorder %s19, 11
      %p126 = por %p124, %p125
      %p127 = scmp.ne.s32.totalorder %s116, %s117
      %p128 = scmp.eq.s32.totalorder %s19, 0
      %p129 = por %p127, %p128
      %p130 = scmp.ne.s32.totalorder %s116, %s117
      %p131 = scmp.eq.s32.totalorder %s20, 11
      %p132 = por %p130, %p131
      %p134 = scmp.ne.s32.totalorder %s117, %s133
      %p135 = scmp.eq.s32.totalorder %s20, 0
      %p136 = por %p134, %p135
      %s138 = sadd.s32 %s137, 1
      %p141 = scmp.eq.s32.totalorder %s14, 11
      %p142 = scmp.ne.s32.totalorder %s137, %s139
      %p143 = scmp.eq.s32.totalorder %s14, 0
      %p144 = por %p142, %p143
      %p145 = scmp.ne.s32.totalorder %s137, %s139
      %p146 = scmp.eq.s32.totalorder %s19, 11
      %p147 = por %p145, %p146
      %p148 = scmp.ne.s32.totalorder %s139, %s140
      %p149 = scmp.eq.s32.totalorder %s19, 0
      %p150 = por %p148, %p149
      %p151 = scmp.ne.s32.totalorder %s139, %s140
      %p152 = scmp.eq.s32.totalorder %s20, 11
      %p153 = por %p151, %p152
      %p155 = scmp.ne.s32.totalorder %s140, %s154
      %p156 = scmp.eq.s32.totalorder %s20, 0
      %p157 = por %p155, %p156
      %s159 = sadd.s32 %s158, 1
      %p162 = scmp.eq.s32.totalorder %s14, 11
      %p163 = scmp.ne.s32.totalorder %s158, %s160
      %p164 = scmp.eq.s32.totalorder %s14, 0
      %p165 = por %p163, %p164
      %p166 = scmp.ne.s32.totalorder %s158, %s160
      %p167 = scmp.eq.s32.totalorder %s19, 11
      %p168 = por %p166, %p167
      %p169 = scmp.ne.s32.totalorder %s160, %s161
      %p170 = scmp.eq.s32.totalorder %s19, 0
      %p171 = por %p169, %p170
      %p172 = scmp.ne.s32.totalorder %s160, %s161
      %p173 = scmp.eq.s32.totalorder %s20, 11
      %p174 = por %p172, %p173
      %p176 = scmp.ne.s32.totalorder %s161, %s175
      %p177 = scmp.eq.s32.totalorder %s20, 0
      %p178 = por %p176, %p177
      %s180 = sadd.s32 %s179, 1
      %p183 = scmp.eq.s32.totalorder %s14, 11
      %p184 = scmp.ne.s32.totalorder %s179, %s181
      %p185 = scmp.eq.s32.totalorder %s14, 0
      %p186 = por %p184, %p185
      %p187 = scmp.ne.s32.totalorder %s179, %s181
      %p188 = scmp.eq.s32.totalorder %s19, 11
      %p189 = por %p187, %p188
      %p190 = scmp.ne.s32.totalorder %s181, %s182
      %p191 = scmp.eq.s32.totalorder %s19, 0
      %p192 = por %p190, %p191
      %p193 = scmp.ne.s32.totalorder %s181, %s182
      %p194 = scmp.eq.s32.totalorder %s20, 11
      %p195 = por %p193, %p194
      %p197 = scmp.ne.s32.totalorder %s182, %s196
      %p198 = scmp.eq.s32.totalorder %s20, 0
      %p199 = por %p197, %p198
      %s201 = sadd.s32 %s200, 1
      %p204 = scmp.eq.s32.totalorder %s14, 11
      %p205 = scmp.ne.s32.totalorder %s200, %s202
      %p206 = scmp.eq.s32.totalorder %s14, 0
      %p207 = por %p205, %p206
      %p208 = scmp.ne.s32.totalorder %s200, %s202
      %p209 = scmp.eq.s32.totalorder %s19, 11
      %p210 = por %p208, %p209
      %p211 = scmp.ne.s32.totalorder %s202, %s203
      %p212 = scmp.eq.s32.totalorder %s19, 0
      %p213 = por %p211, %p212
      %p214 = scmp.ne.s32.totalorder %s202, %s203
      %p215 = scmp.eq.s32.totalorder %s20, 11
      %p216 = por %p214, %p215
      %p218 = scmp.ne.s32.totalorder %s203, %s217
      %p219 = scmp.eq.s32.totalorder %s20, 0
      %p220 = por %p218, %p219
      %s221 = ssub.s32 %s22, %s36
      %p222 = scmp.eq.s32.totalorder %s221, 0
      %s224 = sadd.s32 %s223, 1
      %s225 = scalar_select %p222, %s223, %s224
      %p228 = pneg %p222
      %p229 = scmp.eq.s32.totalorder %s14, 11
      %p230 = por %p228, %p229
      %p231 = scmp.ne.s32.totalorder %s223, %s226
      %p232 = scmp.eq.s32.totalorder %s14, 0
      %p233 = por %p231, %p232
      %p234 = scmp.ne.s32.totalorder %s223, %s226
      %p235 = scmp.eq.s32.totalorder %s19, 11
      %p236 = por %p234, %p235
      %p237 = scmp.ne.s32.totalorder %s226, %s227
      %p238 = scmp.eq.s32.totalorder %s19, 0
      %p239 = por %p237, %p238
      %p240 = scmp.ne.s32.totalorder %s226, %s227
      %p241 = scmp.eq.s32.totalorder %s20, 11
      %p242 = por %p240, %p241
      %p244 = scmp.ne.s32.totalorder %s227, %s243
      %p245 = scmp.eq.s32.totalorder %s20, 0
      %p246 = por %p244, %p245
      %p247 = scmp.le.s32.totalorder 1, %s14
      %p248 = scmp.lt.s32.totalorder %s14, 13
      %p249 = pnand %p247, %p248
      %p250 = pneg %p249
      // Predicated region
      $region9: #{grand_forward.1} parent=5 // pred_check
        _
      $region10: #{grand_forward.1} parent=5 // pred_check_branch
        %252 = sbr.rel (%p249) target = $region12
      $region11: #{grand_forward.1} parent=5 // pred_region
        %s253 = ssub.s32 %s14, 1
        // Predicated region
        $region13: #{grand_forward.1} parent=11 // pred_check
          %p254 = pneg %p82
        $region14: #{grand_forward.1} parent=11 // pred_check_branch
          %256 = sbr.rel (%p254) target = $region16
        $region15: #{grand_forward.1} parent=11 // pred_region
          _
        $region16: #{grand_forward.1} parent=11 // pred_fallthru
          _
        // Predicated region
        $region17: #{grand_forward.1} parent=11 // pred_check
          %p257 = pneg %p103
        $region18: #{grand_forward.1} parent=11 // pred_check_branch
          %259 = sbr.rel (%p257) target = $region20
        $region19: #{grand_forward.1} parent=11 // pred_region
          _
        $region20: #{grand_forward.1} parent=11 // pred_fallthru
          _
        // Predicated region
        $region21: #{grand_forward.1} parent=11 // pred_check
          %p260 = pneg %p150
        $region22: #{grand_forward.1} parent=11 // pred_check_branch
          %262 = sbr.rel (%p260) target = $region24
        $region23: #{grand_forward.1} parent=11 // pred_region
          _
        $region24: #{grand_forward.1} parent=11 // pred_fallthru
          _
        // Predicated region
        $region25: #{grand_forward.1} parent=11 // pred_check
          %p263 = pneg %p171
        $region26: #{grand_forward.1} parent=11 // pred_check_branch
          %265 = sbr.rel (%p263) target = $region28
        $region27: #{grand_forward.1} parent=11 // pred_region
          _
        $region28: #{grand_forward.1} parent=11 // pred_fallthru
          _
        // Predicated region
        $region29: #{grand_forward.1} parent=11 // pred_check
          %p266 = pneg %p192
        $region30: #{grand_forward.1} parent=11 // pred_check_branch
          %268 = sbr.rel (%p266) target = $region32
        $region31: #{grand_forward.1} parent=11 // pred_region
          _
        $region32: #{grand_forward.1} parent=11 // pred_fallthru
          _
        // Predicated region
        $region33: #{grand_forward.1} parent=11 // pred_check
          %p269 = pneg %p213
        $region34: #{grand_forward.1} parent=11 // pred_check_branch
          %271 = sbr.rel (%p269) target = $region36
        $region35: #{grand_forward.1} parent=11 // pred_region
          _
        $region36: #{grand_forward.1} parent=11 // pred_fallthru
          _
      $region12: #{grand_forward.1} parent=5 // pred_fallthru
        _
      %p272 = scmp.lt.s32.totalorder %s14, 12
      // Predicated region
      $region37: #{grand_forward.1} parent=5 // pred_check
        %p273 = pneg %p272
      $region38: #{grand_forward.1} parent=5 // pred_check_branch
        %275 = sbr.rel (%p273) target = $region40
      $region39: #{grand_forward.1} parent=5 // pred_region
        // Predicated region
        $region41: #{grand_forward.1} parent=39 // pred_check
          %p276 = pneg %p55
        $region42: #{grand_forward.1} parent=39 // pred_check_branch
          %278 = sbr.rel (%p276) target = $region44
        $region43: #{grand_forward.1} parent=39 // pred_region
          %s279 = sand.u32 %s45, 1
          %s280 = sand.u32 %s45, 1
          %s281 = smul.addr %s280, 64
          %s282 = scalar_lea.vmem [#allocation5], %s281
          %s283 = smul.u32 16, %s22
          %s284 = smul.addr %s283, 2
          %s285 = sadd.s32 %s23, %s284
          %s286 = smul.addr %s285, 4
          %s287 = scalar_lea.vmem %s0, %s286
          // Predicated region
          $region45: #{grand_forward.1} parent=43 // pred_check
            _
          $region46: #{grand_forward.1} parent=43 // pred_check_branch
            %289 = sbr.rel (0) target = $region48
          $region47: #{grand_forward.1} parent=43 // pred_region
            // Predicated region
            $region49: #{grand_forward.1} parent=47 // pred_check
              _
            $region50: #{grand_forward.1} parent=47 // pred_check_branch
              %291 = sbr.rel target = $region52
            $region51: #{grand_forward.1} parent=47 // pred_region
              // Predicated region
              $region64: #{grand_forward.1} parent=51 // pred_check
                _
              $region65: #{grand_forward.1} parent=51 // pred_check_branch
                %336 = sbr.rel (0) target = $region67
              $region66: #{grand_forward.1} parent=51 // pred_region
                loop: start=0, step=1, limit=1
                $region68: #{grand_forward.1} parent=66 // loop_pre_header
                  _
                $region69: #{grand_forward.1} parent=66 // loop_header
                  %s338 = sphi 0, %s342
                  %p339 = scmp.ge.s32.totalorder %s338, 1
                  %s343 = sphi %s287, %s287
                  %s344 = sphi %s282, %s282
                $region70: #{grand_forward.1} parent=66 // loop_header_branch
                  %341 = sbr.rel (%p339) target = $region74
                $region71: #{grand_forward.1} parent=66 // loop_body
                  _
                $region72: #{grand_forward.1} parent=66 // loop_footer
                  %s342 = sadd.s32 1, %s338
                $region73: #{grand_forward.1} parent=66 // loop_footer_branch
                  %337 = sbr.rel target = $region69
                $region74: #{grand_forward.1} parent=66 // loop_exit
                  _
                loop: start=0, step=1, limit=1
                $region75: #{grand_forward.1} parent=66 // loop_pre_header
                  _
                $region76: #{grand_forward.1} parent=66 // loop_header
                  %s347 = sphi 0, %s351
                  %p348 = scmp.ge.s32.totalorder %s347, 1
                  %s352 = sphi %s287, %s287
                  %s353 = sphi %s282, %s282
                $region77: #{grand_forward.1} parent=66 // loop_header_branch
                  %350 = sbr.rel (%p348) target = $region81
                $region78: #{grand_forward.1} parent=66 // loop_body
                  %v354 = vld [vmem:[%s352] sm:$0xf]
                  %355 = vst [vmem:[%s353] sm:$0xf] %v354
                  %v356 = vld [vmem:[%s352 + $0x8] sm:$0xf]
                  %357 = vst [vmem:[%s353 + $0x4] sm:$0xf] %v356
                  %v358 = vld [vmem:[%s352 + $0x10] sm:$0xf]
                  %359 = vst [vmem:[%s353 + $0x8] sm:$0xf] %v358
                  %v360 = vld [vmem:[%s352 + $0x18] sm:$0xf]
                  %361 = vst [vmem:[%s353 + $0xc] sm:$0xf] %v360
                  %v362 = vld [vmem:[%s352 + $0x20] sm:$0xf]
                  %363 = vst [vmem:[%s353 + $0x10] sm:$0xf] %v362
                  %v364 = vld [vmem:[%s352 + $0x28] sm:$0xf]
                  %365 = vst [vmem:[%s353 + $0x14] sm:$0xf] %v364
                  %v366 = vld [vmem:[%s352 + $0x30] sm:$0xf]
                  %367 = vst [vmem:[%s353 + $0x18] sm:$0xf] %v366
                  %v368 = vld [vmem:[%s352 + $0x38] sm:$0xf]
                  %369 = vst [vmem:[%s353 + $0x1c] sm:$0xf] %v368
                  %v370 = vld [vmem:[%s352 + $0x40] sm:$0xf]
                  %371 = vst [vmem:[%s353 + $0x20] sm:$0xf] %v370
                  %v372 = vld [vmem:[%s352 + $0x48] sm:$0xf]
                  %373 = vst [vmem:[%s353 + $0x24] sm:$0xf] %v372
                  %v374 = vld [vmem:[%s352 + $0x50] sm:$0xf]
                  %375 = vst [vmem:[%s353 + $0x28] sm:$0xf] %v374
                  %v376 = vld [vmem:[%s352 + $0x58] sm:$0xf]
                  %377 = vst [vmem:[%s353 + $0x2c] sm:$0xf] %v376
                  %v378 = vld [vmem:[%s352 + $0x60] sm:$0xf]
                  %379 = vst [vmem:[%s353 + $0x30] sm:$0xf] %v378
                  %v380 = vld [vmem:[%s352 + $0x68] sm:$0xf]
                  %381 = vst [vmem:[%s353 + $0x34] sm:$0xf] %v380
                  %v382 = vld [vmem:[%s352 + $0x70] sm:$0xf]
                  %383 = vst [vmem:[%s353 + $0x38] sm:$0xf] %v382
                  %v384 = vld [vmem:[%s352 + $0x78] sm:$0xf]
                  %385 = vst [vmem:[%s353 + $0x3c] sm:$0xf] %v384
                $region79: #{grand_forward.1} parent=66 // loop_footer
                  %s351 = sadd.s32 1, %s347
                $region80: #{grand_forward.1} parent=66 // loop_footer_branch
                  %346 = sbr.rel target = $region76
                $region81: #{grand_forward.1} parent=66 // loop_exit
                  _
              $region67: #{grand_forward.1} parent=51 // pred_fallthru
                _
            $region52: #{grand_forward.1} parent=47 // pred_fallthru
              _
            // Predicated region
            $region53: #{grand_forward.1} parent=47 // pred_check
              _
            $region54: #{grand_forward.1} parent=47 // pred_check_branch
              %293 = sbr.rel (0) target = $region56
            $region55: #{grand_forward.1} parent=47 // pred_region
              loop: start=0, step=1, limit=1
              $region57: #{grand_forward.1} parent=55 // loop_pre_header
                _
              $region58: #{grand_forward.1} parent=55 // loop_header
                %s296 = sphi 0, %s300
                %p297 = scmp.ge.s32.totalorder %s296, 1
                %s301 = sphi %s287, %s287
                %s302 = sphi %s282, %s282
              $region59: #{grand_forward.1} parent=55 // loop_header_branch
                %299 = sbr.rel (%p297) target = $region63
              $region60: #{grand_forward.1} parent=55 // loop_body
                %v303 = vld [vmem:[%s301] sm:$0xf]
                %304 = vst [vmem:[%s302] sm:$0xf] %v303
                %v305 = vld [vmem:[%s301 + $0x8] sm:$0xf]
                %306 = vst [vmem:[%s302 + $0x4] sm:$0xf] %v305
                %v307 = vld [vmem:[%s301 + $0x10] sm:$0xf]
                %308 = vst [vmem:[%s302 + $0x8] sm:$0xf] %v307
                %v309 = vld [vmem:[%s301 + $0x18] sm:$0xf]
                %310 = vst [vmem:[%s302 + $0xc] sm:$0xf] %v309
                %v311 = vld [vmem:[%s301 + $0x20] sm:$0xf]
                %312 = vst [vmem:[%s302 + $0x10] sm:$0xf] %v311
                %v313 = vld [vmem:[%s301 + $0x28] sm:$0xf]
                %314 = vst [vmem:[%s302 + $0x14] sm:$0xf] %v313
                %v315 = vld [vmem:[%s301 + $0x30] sm:$0xf]
                %316 = vst [vmem:[%s302 + $0x18] sm:$0xf] %v315
                %v317 = vld [vmem:[%s301 + $0x38] sm:$0xf]
                %318 = vst [vmem:[%s302 + $0x1c] sm:$0xf] %v317
                %v319 = vld [vmem:[%s301 + $0x40] sm:$0xf]
                %320 = vst [vmem:[%s302 + $0x20] sm:$0xf] %v319
                %v321 = vld [vmem:[%s301 + $0x48] sm:$0xf]
                %322 = vst [vmem:[%s302 + $0x24] sm:$0xf] %v321
                %v323 = vld [vmem:[%s301 + $0x50] sm:$0xf]
                %324 = vst [vmem:[%s302 + $0x28] sm:$0xf] %v323
                %v325 = vld [vmem:[%s301 + $0x58] sm:$0xf]
                %326 = vst [vmem:[%s302 + $0x2c] sm:$0xf] %v325
                %v327 = vld [vmem:[%s301 + $0x60] sm:$0xf]
                %328 = vst [vmem:[%s302 + $0x30] sm:$0xf] %v327
                %v329 = vld [vmem:[%s301 + $0x68] sm:$0xf]
                %330 = vst [vmem:[%s302 + $0x34] sm:$0xf] %v329
                %v331 = vld [vmem:[%s301 + $0x70] sm:$0xf]
                %332 = vst [vmem:[%s302 + $0x38] sm:$0xf] %v331
                %v333 = vld [vmem:[%s301 + $0x78] sm:$0xf]
                %334 = vst [vmem:[%s302 + $0x3c] sm:$0xf] %v333
              $region61: #{grand_forward.1} parent=55 // loop_footer
                %s300 = sadd.s32 1, %s296
              $region62: #{grand_forward.1} parent=55 // loop_footer_branch
                %295 = sbr.rel target = $region58
              $region63: #{grand_forward.1} parent=55 // loop_exit
                _
            $region56: #{grand_forward.1} parent=47 // pred_fallthru
              _
          $region48: #{grand_forward.1} parent=43 // pred_fallthru
            _
          %386 = vnop
        $region44: #{grand_forward.1} parent=39 // pred_fallthru
          _
        // Predicated region
        $region82: #{grand_forward.1} parent=39 // pred_check
          %p387 = pneg %p123
        $region83: #{grand_forward.1} parent=39 // pred_check_branch
          %389 = sbr.rel (%p387) target = $region85
        $region84: #{grand_forward.1} parent=39 // pred_region
          %s390 = smul.u32 16, %s22
          %p391 = scmp.lt.s32.totalorder %s390, 31
          %s392 = scalar_select %p391, %s390, 31
          %s393 = smul.addr %s392, 8
          %s394 = scalar_lea.vmem %s3, %s393
          %s395 = smul.u32 16, %s22
        $region85: #{grand_forward.1} parent=39 // pred_fallthru
          _
      $region40: #{grand_forward.1} parent=5 // pred_fallthru
        _
      %p396 = scmp.le.s32.totalorder 1, %s14
      %p397 = scmp.lt.s32.totalorder %s14, 13
      %p398 = pnand %p396, %p397
      %p399 = pneg %p398
      // Predicated region
      $region86: #{grand_forward.1} parent=5 // pred_check
        _
      $region87: #{grand_forward.1} parent=5 // pred_check_branch
        %401 = sbr.rel (%p398) target = $region89
      $region88: #{grand_forward.1} parent=5 // pred_region
        %s402 = ssub.s32 %s14, 1
        %s403 = sand.u32 %s48, 1
        %s404 = sand.u32 %s48, 1
        %s405 = smul.addr %s404, 64
        %s406 = scalar_lea.vmem [#allocation5], %s405
        // Predicated region
        $region90: #{grand_forward.1} parent=88 // pred_check
          %p407 = pneg %p61
        $region91: #{grand_forward.1} parent=88 // pred_check_branch
          %409 = sbr.rel (%p407) target = $region93
        $region92: #{grand_forward.1} parent=88 // pred_region
          _
        $region93: #{grand_forward.1} parent=88 // pred_fallthru
          _
        %s410 = sand.u32 %s48, 1
        %s411 = sand.u32 %s48, 1
        %s412 = smul.addr %s411, 64
        %s413 = scalar_lea.vmem [#allocation5], %s412
        %p414 = pneg %p61
        %p415 = pneg %p58
        %p416 = pneg %p82
        %p417 = pneg %p79
        %p418 = pneg %p103
        %p419 = pneg %p100
        %s420 = smul.u32 16, %s25
        %p421 = scmp.lt.s32.totalorder %s420, 31
        %s422 = scalar_select %p421, %s420, 31
        %s423 = smul.addr %s422, 8
        %s424 = scalar_lea.vmem %s3, %s423
        %p425 = pneg %p129
        %p426 = pneg %p126
        %p427 = pneg %p150
        %p428 = pneg %p147
        %p429 = pneg %p171
        %p430 = pneg %p168
        %p431 = pneg %p192
        %p432 = pneg %p189
        %p433 = pneg %p213
        %p434 = pneg %p210
        %p435 = pneg %p239
        %p436 = pneg %p236
        %s437 = smul.u32 16, %s25
        %p438 = scmp.lt.s32.totalorder %s437, 31
        %s439 = scalar_select %p438, %s437, 31
        %s440 = smul.addr %s439, 8
        %s441 = scalar_lea.vmem %s8, %s440
        %s442 = smul.u32 16, %s25
        %s443 = smul.u32 16, %s25
        %p444 = scmp.lt.s32.totalorder %s443, 31
        %s445 = scalar_select %p444, %s443, 31
        %s446 = smul.addr %s445, 8
        %s447 = scalar_lea.vmem %s3, %s446
        %s448 = smul.u32 16, %s25
        %s449 = smul.u32 16, %s25
        %p450 = scmp.lt.s32.totalorder %s449, 31
        %s451 = scalar_select %p450, %s449, 31
        %s452 = smul.addr %s451, 8
        %s453 = scalar_lea.vmem %s8, %s452
        %s454 = smul.u32 16, %s25
        %p456 = scmp.eq.s32.totalorder %s24, 0
        %p457 = scmp.eq.s32.totalorder %s25, 0
        %p458 = pnand %p456, %p457
        %p459 = pneg %p458
        %p460 = scmp.eq.s32.totalorder %s26, 0
        %p461 = pnand %p459, %p460
        %p462 = pneg %p461
        // Predicated region
        $region94: #{grand_forward.1} parent=88 // pred_check
          _
        $region95: #{grand_forward.1} parent=88 // pred_check_branch
          %464 = sbr.rel (%p461) target = $region97
        $region96: #{grand_forward.1} parent=88 // pred_region
          %v465 = vld [vmem:[%s1] sm:$0xf]
          %v466 = vld [vmem:[%s1 + $0x4] sm:$0xf]
          %v467 = vld [vmem:[%s1 + $0x8] sm:$0xf]
          %v468 = vld [vmem:[%s1 + $0xc] sm:$0xf]
          %v469 = vld [vmem:[%s1 + $0x10] sm:$0xf]
          %v470 = vld [vmem:[%s1 + $0x14] sm:$0xf]
          %v471 = vld [vmem:[%s1 + $0x18] sm:$0xf]
          %v472 = vld [vmem:[%s1 + $0x1c] sm:$0xf]
          %v473 = vld [vmem:[%s1 + $0x20] sm:$0xf]
          %v474 = vld [vmem:[%s1 + $0x24] sm:$0xf]
          %v475 = vld [vmem:[%s1 + $0x28] sm:$0xf]
          %v476 = vld [vmem:[%s1 + $0x2c] sm:$0xf]
          %v477 = vld [vmem:[%s1 + $0x30] sm:$0xf]
          %v478 = vld [vmem:[%s1 + $0x34] sm:$0xf]
          %v479 = vld [vmem:[%s1 + $0x38] sm:$0xf]
          %v480 = vld [vmem:[%s1 + $0x3c] sm:$0xf]
          %v481 = vld [vmem:[%s1 + $0x40] sm:$0xf]
          %v482 = vld [vmem:[%s1 + $0x44] sm:$0xf]
          %v483 = vld [vmem:[%s1 + $0x48] sm:$0xf]
          %v484 = vld [vmem:[%s1 + $0x4c] sm:$0xf]
          %v485 = vld [vmem:[%s1 + $0x50] sm:$0xf]
          %v486 = vld [vmem:[%s1 + $0x54] sm:$0xf]
          %v487 = vld [vmem:[%s1 + $0x58] sm:$0xf]
          %v488 = vld [vmem:[%s1 + $0x5c] sm:$0xf]
          %v489 = vld [vmem:[%s1 + $0x60] sm:$0xf]
          %v490 = vld [vmem:[%s1 + $0x64] sm:$0xf]
          %v491 = vld [vmem:[%s1 + $0x68] sm:$0xf]
          %v492 = vld [vmem:[%s1 + $0x6c] sm:$0xf]
          %v493 = vld [vmem:[%s1 + $0x70] sm:$0xf]
          %v494 = vld [vmem:[%s1 + $0x74] sm:$0xf]
          %v495 = vld [vmem:[%s1 + $0x78] sm:$0xf]
          %v496 = vld [vmem:[%s1 + $0x7c] sm:$0xf]
          %v529 = vunpack.c.l.b16 %v465
          %v530 = vunpack.c.l.b16 %v466
          %v531 = vunpack.c.l.b16 %v467
          %v532 = vunpack.c.l.b16 %v468
          %v533 = vunpack.c.l.b16 %v469
          %v534 = vunpack.c.l.b16 %v470
          %v535 = vunpack.c.l.b16 %v471
          %v536 = vunpack.c.l.b16 %v472
          %v537 = vunpack.c.l.b16 %v473
          %v538 = vunpack.c.l.b16 %v474
          %v539 = vunpack.c.l.b16 %v475
          %v540 = vunpack.c.l.b16 %v476
          %v541 = vunpack.c.l.b16 %v477
          %v542 = vunpack.c.l.b16 %v478
          %v543 = vunpack.c.l.b16 %v479
          %v544 = vunpack.c.l.b16 %v480
          %v545 = vunpack.c.l.b16 %v481
          %v546 = vunpack.c.l.b16 %v482
          %v547 = vunpack.c.l.b16 %v483
          %v548 = vunpack.c.l.b16 %v484
          %v549 = vunpack.c.l.b16 %v485
          %v550 = vunpack.c.l.b16 %v486
          %v551 = vunpack.c.l.b16 %v487
          %v552 = vunpack.c.l.b16 %v488
          %v553 = vunpack.c.l.b16 %v489
          %v554 = vunpack.c.l.b16 %v490
          %v555 = vunpack.c.l.b16 %v491
          %v556 = vunpack.c.l.b16 %v492
          %v557 = vunpack.c.l.b16 %v493
          %v558 = vunpack.c.l.b16 %v494
          %v559 = vunpack.c.l.b16 %v495
          %v560 = vunpack.c.l.b16 %v496
          %v561 = vpack.c.b16 %v530, %v529
          %v562 = vpack.c.b16 %v532, %v531
          %v563 = vpack.c.b16 %v534, %v533
          %v564 = vpack.c.b16 %v536, %v535
          %v565 = vpack.c.b16 %v538, %v537
          %v566 = vpack.c.b16 %v540, %v539
          %v567 = vpack.c.b16 %v542, %v541
          %v568 = vpack.c.b16 %v544, %v543
          %v569 = vpack.c.b16 %v546, %v545
          %v570 = vpack.c.b16 %v548, %v547
          %v571 = vpack.c.b16 %v550, %v549
          %v572 = vpack.c.b16 %v552, %v551
          %v573 = vpack.c.b16 %v554, %v553
          %v574 = vpack.c.b16 %v556, %v555
          %v575 = vpack.c.b16 %v558, %v557
          %v576 = vpack.c.b16 %v560, %v559
          %593 = vst [vmem:[#allocation2] sm:$0xff] %v561
          %594 = vst [vmem:[#allocation2 + $0x8] sm:$0xff] %v562
          %595 = vst [vmem:[#allocation2 + $0x10] sm:$0xff] %v563
          %596 = vst [vmem:[#allocation2 + $0x18] sm:$0xff] %v564
          %597 = vst [vmem:[#allocation2 + $0x20] sm:$0xff] %v565
          %598 = vst [vmem:[#allocation2 + $0x28] sm:$0xff] %v566
          %599 = vst [vmem:[#allocation2 + $0x30] sm:$0xff] %v567
          %600 = vst [vmem:[#allocation2 + $0x38] sm:$0xff] %v568
          %601 = vst [vmem:[#allocation2 + $0x40] sm:$0xff] %v569
          %602 = vst [vmem:[#allocation2 + $0x48] sm:$0xff] %v570
          %603 = vst [vmem:[#allocation2 + $0x50] sm:$0xff] %v571
          %604 = vst [vmem:[#allocation2 + $0x58] sm:$0xff] %v572
          %605 = vst [vmem:[#allocation2 + $0x60] sm:$0xff] %v573
          %606 = vst [vmem:[#allocation2 + $0x68] sm:$0xff] %v574
          %607 = vst [vmem:[#allocation2 + $0x70] sm:$0xff] %v575
          %608 = vst [vmem:[#allocation2 + $0x78] sm:$0xff] %v576
          %v609 = vld [vmem:[%s2] sm:$0xff]
          %v610 = vld [vmem:[%s2 + $0x8] sm:$0xff]
          %v611 = vld [vmem:[%s2 + $0x10] sm:$0xff]
          %v612 = vld [vmem:[%s2 + $0x18] sm:$0xff]
          %v613 = vld [vmem:[%s2 + $0x20] sm:$0xff]
          %v614 = vld [vmem:[%s2 + $0x28] sm:$0xff]
          %v615 = vld [vmem:[%s2 + $0x30] sm:$0xff]
          %v616 = vld [vmem:[%s2 + $0x38] sm:$0xff]
          %v617 = vld [vmem:[%s2 + $0x40] sm:$0xff]
          %v618 = vld [vmem:[%s2 + $0x48] sm:$0xff]
          %v619 = vld [vmem:[%s2 + $0x50] sm:$0xff]
          %v620 = vld [vmem:[%s2 + $0x58] sm:$0xff]
          %v621 = vld [vmem:[%s2 + $0x60] sm:$0xff]
          %v622 = vld [vmem:[%s2 + $0x68] sm:$0xff]
          %v623 = vld [vmem:[%s2 + $0x70] sm:$0xff]
          %v624 = vld [vmem:[%s2 + $0x78] sm:$0xff]
          %v625 = vld [vmem:[%s2 + $0x80] sm:$0xff]
          %v626 = vld [vmem:[%s2 + $0x88] sm:$0xff]
          %v627 = vld [vmem:[%s2 + $0x90] sm:$0xff]
          %v628 = vld [vmem:[%s2 + $0x98] sm:$0xff]
          %v629 = vld [vmem:[%s2 + $0xa0] sm:$0xff]
          %v630 = vld [vmem:[%s2 + $0xa8] sm:$0xff]
          %v631 = vld [vmem:[%s2 + $0xb0] sm:$0xff]
          %v632 = vld [vmem:[%s2 + $0xb8] sm:$0xff]
          %v633 = vld [vmem:[%s2 + $0xc0] sm:$0xff]
          %v634 = vld [vmem:[%s2 + $0xc8] sm:$0xff]
          %v635 = vld [vmem:[%s2 + $0xd0] sm:$0xff]
          %v636 = vld [vmem:[%s2 + $0xd8] sm:$0xff]
          %v637 = vld [vmem:[%s2 + $0xe0] sm:$0xff]
          %v638 = vld [vmem:[%s2 + $0xe8] sm:$0xff]
          %v639 = vld [vmem:[%s2 + $0xf0] sm:$0xff]
          %v640 = vld [vmem:[%s2 + $0xf8] sm:$0xff]
          %641 = vst [vmem:[#allocation3] sm:$0xff] %v609
          %642 = vst [vmem:[#allocation3 + $0x8] sm:$0xff] %v610
          %643 = vst [vmem:[#allocation3 + $0x10] sm:$0xff] %v611
          %644 = vst [vmem:[#allocation3 + $0x18] sm:$0xff] %v612
          %645 = vst [vmem:[#allocation3 + $0x20] sm:$0xff] %v613
          %646 = vst [vmem:[#allocation3 + $0x28] sm:$0xff] %v614
          %647 = vst [vmem:[#allocation3 + $0x30] sm:$0xff] %v615
          %648 = vst [vmem:[#allocation3 + $0x38] sm:$0xff] %v616
          %649 = vst [vmem:[#allocation3 + $0x40] sm:$0xff] %v617
          %650 = vst [vmem:[#allocation3 + $0x48] sm:$0xff] %v618
          %651 = vst [vmem:[#allocation3 + $0x50] sm:$0xff] %v619
          %652 = vst [vmem:[#allocation3 + $0x58] sm:$0xff] %v620
          %653 = vst [vmem:[#allocation3 + $0x60] sm:$0xff] %v621
          %654 = vst [vmem:[#allocation3 + $0x68] sm:$0xff] %v622
          %655 = vst [vmem:[#allocation3 + $0x70] sm:$0xff] %v623
          %656 = vst [vmem:[#allocation3 + $0x78] sm:$0xff] %v624
          %657 = vst [vmem:[#allocation3 + $0x80] sm:$0xff] %v625
          %658 = vst [vmem:[#allocation3 + $0x88] sm:$0xff] %v626
          %659 = vst [vmem:[#allocation3 + $0x90] sm:$0xff] %v627
          %660 = vst [vmem:[#allocation3 + $0x98] sm:$0xff] %v628
          %661 = vst [vmem:[#allocation3 + $0xa0] sm:$0xff] %v629
          %662 = vst [vmem:[#allocation3 + $0xa8] sm:$0xff] %v630
          %663 = vst [vmem:[#allocation3 + $0xb0] sm:$0xff] %v631
          %664 = vst [vmem:[#allocation3 + $0xb8] sm:$0xff] %v632
          %665 = vst [vmem:[#allocation3 + $0xc0] sm:$0xff] %v633
          %666 = vst [vmem:[#allocation3 + $0xc8] sm:$0xff] %v634
          %667 = vst [vmem:[#allocation3 + $0xd0] sm:$0xff] %v635
          %668 = vst [vmem:[#allocation3 + $0xd8] sm:$0xff] %v636
          %669 = vst [vmem:[#allocation3 + $0xe0] sm:$0xff] %v637
          %670 = vst [vmem:[#allocation3 + $0xe8] sm:$0xff] %v638
          %671 = vst [vmem:[#allocation3 + $0xf0] sm:$0xff] %v639
          %672 = vst [vmem:[#allocation3 + $0xf8] sm:$0xff] %v640
        $region97: #{grand_forward.1} parent=88 // pred_fallthru
          _
        // Predicated region
        $region98: #{grand_forward.1} parent=88 // pred_check
          %p673 = pneg %p460
        $region99: #{grand_forward.1} parent=88 // pred_check_branch
          %675 = sbr.rel (%p673) target = $region101
        $region100: #{grand_forward.1} parent=88 // pred_region
          %676 = vst [vmem:[#allocation4] sm:$0xff] 0.0
          %677 = vst [vmem:[#allocation4 + $0x8] sm:$0xff] 0.0
          %678 = vst [vmem:[#allocation4 + $0x10] sm:$0xff] 0.0
          %679 = vst [vmem:[#allocation4 + $0x18] sm:$0xff] 0.0
          %680 = vst [vmem:[#allocation4 + $0x20] sm:$0xff] 0.0
          %681 = vst [vmem:[#allocation4 + $0x28] sm:$0xff] 0.0
          %682 = vst [vmem:[#allocation4 + $0x30] sm:$0xff] 0.0
          %683 = vst [vmem:[#allocation4 + $0x38] sm:$0xff] 0.0
          %684 = vst [vmem:[#allocation4 + $0x40] sm:$0xff] 0.0
          %685 = vst [vmem:[#allocation4 + $0x48] sm:$0xff] 0.0
          %686 = vst [vmem:[#allocation4 + $0x50] sm:$0xff] 0.0
          %687 = vst [vmem:[#allocation4 + $0x58] sm:$0xff] 0.0
          %688 = vst [vmem:[#allocation4 + $0x60] sm:$0xff] 0.0
          %689 = vst [vmem:[#allocation4 + $0x68] sm:$0xff] 0.0
          %690 = vst [vmem:[#allocation4 + $0x70] sm:$0xff] 0.0
          %691 = vst [vmem:[#allocation4 + $0x78] sm:$0xff] 0.0
        $region101: #{grand_forward.1} parent=88 // pred_fallthru
          _
        %p692 = scmp.lt.s32.totalorder %s24, 0
        %s693 = ssub.s32 0, %s24
        %s694 = scalar_select %p692, %s693, %s24
        %s695 = sand.u32 %s694, 1
        %s696 = ssub.s32 0, %s695
        %s697 = scalar_select %p692, %s696, %s695
        %p698 = scmp.ne.s32.totalorder %s697, 0
        %p699 = scmp.lt.s32.totalorder %s697, 0
        %p700 = pnand %p699, %p698
        %p701 = pneg %p700
        %s702 = sadd.s32 %s697, 2
        %s703 = scalar_select %p701, %s702, %s697
        %s704 = smul.u32 %s703, 256
        %s705 = smul.u32 %s26, 128
        %s706 = sadd.s32 %s704, %s705
        %s707 = sshra.s32 %s706, 4
        %s708 = sand.u32 %s706, 15
        %s709 = smul.addr %s707, 8
        %s710 = scalar_lea.vmem [#allocation2], %s709
        %v711 = vld [vmem:[%s710] sm:$0xff]
        %v712 = vld [vmem:[%s710 + $0x8] sm:$0xff]
        %v713 = vld [vmem:[%s710 + $0x10] sm:$0xff]
        %v714 = vld [vmem:[%s710 + $0x18] sm:$0xff]
        %v715 = vld [vmem:[%s710 + $0x20] sm:$0xff]
        %v716 = vld [vmem:[%s710 + $0x28] sm:$0xff]
        %v717 = vld [vmem:[%s710 + $0x30] sm:$0xff]
        %v718 = vld [vmem:[%s710 + $0x38] sm:$0xff]
        %v719 = vld [vmem:[#allocation4] sm:$0xff]
        %v720 = vld [vmem:[#allocation4 + $0x8] sm:$0xff]
        %v721 = vld [vmem:[#allocation4 + $0x10] sm:$0xff]
        %v722 = vld [vmem:[#allocation4 + $0x18] sm:$0xff]
        %v723 = vld [vmem:[#allocation4 + $0x20] sm:$0xff]
        %v724 = vld [vmem:[#allocation4 + $0x28] sm:$0xff]
        %v725 = vld [vmem:[#allocation4 + $0x30] sm:$0xff]
        %v726 = vld [vmem:[#allocation4 + $0x38] sm:$0xff]
        %v727 = vld [vmem:[#allocation4 + $0x40] sm:$0xff]
        %v728 = vld [vmem:[#allocation4 + $0x48] sm:$0xff]
        %v729 = vld [vmem:[#allocation4 + $0x50] sm:$0xff]
        %v730 = vld [vmem:[#allocation4 + $0x58] sm:$0xff]
        %v731 = vld [vmem:[#allocation4 + $0x60] sm:$0xff]
        %v732 = vld [vmem:[#allocation4 + $0x68] sm:$0xff]
        %v733 = vld [vmem:[#allocation4 + $0x70] sm:$0xff]
        %v734 = vld [vmem:[#allocation4 + $0x78] sm:$0xff]
        %v735 = vld [vmem:[%s406] sm:$0xf]
        %v736 = vld [vmem:[%s406 + $0x4] sm:$0xf]
        %v737 = vld [vmem:[%s406 + $0x8] sm:$0xf]
        %v738 = vld [vmem:[%s406 + $0xc] sm:$0xf]
        %v739 = vld [vmem:[%s406 + $0x10] sm:$0xf]
        %v740 = vld [vmem:[%s406 + $0x14] sm:$0xf]
        %v741 = vld [vmem:[%s406 + $0x18] sm:$0xf]
        %v742 = vld [vmem:[%s406 + $0x1c] sm:$0xf]
        %v743 = vld [vmem:[%s406 + $0x20] sm:$0xf]
        %v744 = vld [vmem:[%s406 + $0x24] sm:$0xf]
        %v745 = vld [vmem:[%s406 + $0x28] sm:$0xf]
        %v746 = vld [vmem:[%s406 + $0x2c] sm:$0xf]
        %v747 = vld [vmem:[%s406 + $0x30] sm:$0xf]
        %v748 = vld [vmem:[%s406 + $0x34] sm:$0xf]
        %v749 = vld [vmem:[%s406 + $0x38] sm:$0xf]
        %v750 = vld [vmem:[%s406 + $0x3c] sm:$0xf]
        %v767 = vunpack.c.l.b16 %v735
        %v768 = vunpack.c.l.b16 %v736
        %v769 = vunpack.c.l.b16 %v737
        %v770 = vunpack.c.l.b16 %v738
        %v771 = vunpack.c.l.b16 %v739
        %v772 = vunpack.c.l.b16 %v740
        %v773 = vunpack.c.l.b16 %v741
        %v774 = vunpack.c.l.b16 %v742
        %v775 = vunpack.c.l.b16 %v743
        %v776 = vunpack.c.l.b16 %v744
        %v777 = vunpack.c.l.b16 %v745
        %v778 = vunpack.c.l.b16 %v746
        %v779 = vunpack.c.l.b16 %v747
        %v780 = vunpack.c.l.b16 %v748
        %v781 = vunpack.c.l.b16 %v749
        %v782 = vunpack.c.l.b16 %v750
        %v783 = vpack.c.b16 %v768, %v767
        %v784 = vpack.c.b16 %v770, %v769
        %v785 = vpack.c.b16 %v772, %v771
        %v786 = vpack.c.b16 %v774, %v773
        %v787 = vpack.c.b16 %v776, %v775
        %v788 = vpack.c.b16 %v778, %v777
        %v789 = vpack.c.b16 %v780, %v779
        %v790 = vpack.c.b16 %v782, %v781
        %799 = vmatprep.subr.bf16.mxu0 0
        %800 = vmatpush1.bf16.msra.mxu0 %v711
        %801 = vmatprep.subr.bf16.mxu0 0
        %802 = vmatpush1.bf16.msra.mxu0 %v712
        %803 = vmatprep.subr.bf16.mxu0 0
        %804 = vmatpush1.bf16.msra.mxu0 %v713
        %805 = vmatprep.subr.bf16.mxu0 0
        %806 = vmatpush1.bf16.msra.mxu0 %v714
        %807 = vmatprep.subr.bf16.mxu0 0
        %808 = vmatpush1.bf16.msra.mxu0 %v715
        %809 = vmatprep.subr.bf16.mxu0 0
        %810 = vmatpush1.bf16.msra.mxu0 %v716
        %811 = vmatprep.subr.bf16.mxu0 0
        %812 = vmatpush1.bf16.msra.mxu0 %v717
        %813 = vmatprep.subr.bf16.mxu0 0
        %814 = vmatpush1.bf16.msra.mxu0 %v718
        %815 = vmatprep.subr.bf16.mxu0 0
        %816 = vmatpush1.bf16.msra.mxu0 0
        %817 = vmatprep.subr.bf16.mxu0 0
        %818 = vmatpush1.bf16.msra.mxu0 0
        %819 = vmatprep.subr.bf16.mxu0 0
        %820 = vmatpush1.bf16.msra.mxu0 0
        %821 = vmatprep.subr.bf16.mxu0 0
        %822 = vmatpush1.bf16.msra.mxu0 0
        %823 = vmatprep.subr.bf16.mxu0 0
        %824 = vmatpush1.bf16.msra.mxu0 0
        %825 = vmatprep.subr.bf16.mxu0 0
        %826 = vmatpush1.bf16.msra.mxu0 0
        %827 = vmatprep.subr.bf16.mxu0 0
        %828 = vmatpush1.bf16.msra.mxu0 0
        %829 = vmatprep.subr.bf16.mxu0 0
        %830 = vmatpush1.bf16.msra.mxu0 0
        %831 = vmatprep.mubr.bf16.mxu0 0
        %832 = vmatmul.mubr.bf16.gmra.mrb[0].mxu0 %v783
        %v833 = vpop.f32.mrb[0].mxu0
        %v834 = vadd.f32 0.0, %v833
        %v835 = vpop.f32.mrb[0].mxu0
        %v836 = vpop.f32.mrb[0].mxu0
        %v837 = vadd.f32 0.0, %v836
        %v838 = vpop.f32.mrb[0].mxu0
        %839 = vmatprep.mubr.bf16.mxu0 0
        %840 = vmatmul.mubr.bf16.gmra.mrb[0].mxu0 %v784
        %v841 = vpop.f32.mrb[0].mxu0
        %v842 = vadd.f32 0.0, %v841
        %v843 = vpop.f32.mrb[0].mxu0
        %v844 = vpop.f32.mrb[0].mxu0
        %v845 = vadd.f32 0.0, %v844
        %v846 = vpop.f32.mrb[0].mxu0
        %847 = vmatprep.mubr.bf16.mxu0 0
        %848 = vmatmul.mubr.bf16.gmra.mrb[0].mxu0 %v785
        %v849 = vpop.f32.mrb[0].mxu0
        %v850 = vadd.f32 0.0, %v849
        %v851 = vpop.f32.mrb[0].mxu0
        %v852 = vpop.f32.mrb[0].mxu0
        %v853 = vadd.f32 0.0, %v852
        %v854 = vpop.f32.mrb[0].mxu0
        %855 = vmatprep.mubr.bf16.mxu0 0
        %856 = vmatmul.mubr.bf16.gmra.mrb[0].mxu0 %v786
        %v857 = vpop.f32.mrb[0].mxu0
        %v858 = vadd.f32 0.0, %v857
        %v859 = vpop.f32.mrb[0].mxu0
        %v860 = vpop.f32.mrb[0].mxu0
        %v861 = vadd.f32 0.0, %v860
        %v862 = vpop.f32.mrb[0].mxu0
        %863 = vmatprep.mubr.bf16.mxu0 0
        %864 = vmatmul.mubr.bf16.gmra.mrb[0].mxu0 %v787
        %v865 = vpop.f32.mrb[0].mxu0
        %v866 = vadd.f32 0.0, %v865
        %v867 = vpop.f32.mrb[0].mxu0
        %v868 = vpop.f32.mrb[0].mxu0
        %v869 = vadd.f32 0.0, %v868
        %v870 = vpop.f32.mrb[0].mxu0
        %871 = vmatprep.mubr.bf16.mxu0 0
        %872 = vmatmul.mubr.bf16.gmra.mrb[0].mxu0 %v788
        %v873 = vpop.f32.mrb[0].mxu0
        %v874 = vadd.f32 0.0, %v873
        %v875 = vpop.f32.mrb[0].mxu0
        %v876 = vpop.f32.mrb[0].mxu0
        %v877 = vadd.f32 0.0, %v876
        %v878 = vpop.f32.mrb[0].mxu0
        %879 = vmatprep.mubr.bf16.mxu0 0
        %880 = vmatmul.mubr.bf16.gmra.mrb[0].mxu0 %v789
        %v881 = vpop.f32.mrb[0].mxu0
        %v882 = vadd.f32 0.0, %v881
        %v883 = vpop.f32.mrb[0].mxu0
        %v884 = vpop.f32.mrb[0].mxu0
        %v885 = vadd.f32 0.0, %v884
        %v886 = vpop.f32.mrb[0].mxu0
        %887 = vmatprep.mubr.bf16.mxu0 0
        %888 = vmatmul.mubr.bf16.gmra.mrb[0].mxu0 %v790
        %v889 = vpop.f32.mrb[0].mxu0
        %v890 = vadd.f32 0.0, %v889
        %v891 = vpop.f32.mrb[0].mxu0
        %v892 = vpop.f32.mrb[0].mxu0
        %v893 = vadd.f32 0.0, %v892
        %v894 = vpop.f32.mrb[0].mxu0
        %895 = vdwg.mxu0
        %v896 = vadd.f32 %v719, %v834
        %v897 = vadd.f32 %v720, %v837
        %v898 = vadd.f32 %v721, %v842
        %v899 = vadd.f32 %v722, %v845
        %v900 = vadd.f32 %v723, %v850
        %v901 = vadd.f32 %v724, %v853
        %v902 = vadd.f32 %v725, %v858
        %v903 = vadd.f32 %v726, %v861
        %v904 = vadd.f32 %v727, %v866
        %v905 = vadd.f32 %v728, %v869
        %v906 = vadd.f32 %v729, %v874
        %v907 = vadd.f32 %v730, %v877
        %v908 = vadd.f32 %v731, %v882
        %v909 = vadd.f32 %v732, %v885
        %v910 = vadd.f32 %v733, %v890
        %v911 = vadd.f32 %v734, %v893
        %912 = vst [vmem:[#allocation4] sm:$0xff] %v896
        %913 = vst [vmem:[#allocation4 + $0x8] sm:$0xff] %v897
        %914 = vst [vmem:[#allocation4 + $0x10] sm:$0xff] %v898
        %915 = vst [vmem:[#allocation4 + $0x18] sm:$0xff] %v899
        %916 = vst [vmem:[#allocation4 + $0x20] sm:$0xff] %v900
        %917 = vst [vmem:[#allocation4 + $0x28] sm:$0xff] %v901
        %918 = vst [vmem:[#allocation4 + $0x30] sm:$0xff] %v902
        %919 = vst [vmem:[#allocation4 + $0x38] sm:$0xff] %v903
        %920 = vst [vmem:[#allocation4 + $0x40] sm:$0xff] %v904
        %921 = vst [vmem:[#allocation4 + $0x48] sm:$0xff] %v905
        %922 = vst [vmem:[#allocation4 + $0x50] sm:$0xff] %v906
        %923 = vst [vmem:[#allocation4 + $0x58] sm:$0xff] %v907
        %924 = vst [vmem:[#allocation4 + $0x60] sm:$0xff] %v908
        %925 = vst [vmem:[#allocation4 + $0x68] sm:$0xff] %v909
        %926 = vst [vmem:[#allocation4 + $0x70] sm:$0xff] %v910
        %927 = vst [vmem:[#allocation4 + $0x78] sm:$0xff] %v911
        %p928 = scmp.eq.s32.totalorder %s26, 1
        // Predicated region
        $region102: #{grand_forward.1} parent=88 // pred_check
          %p929 = pneg %p928
        $region103: #{grand_forward.1} parent=88 // pred_check_branch
          %931 = sbr.rel (%p929) target = $region105
        $region104: #{grand_forward.1} parent=88 // pred_region
          %v932 = vld [vmem:[%s447] sm:$0xff]
          %v933 = vld [vmem:[%s447 + $0x8] sm:$0xff]
          %v934 = vld [vmem:[%s447 + $0x10] sm:$0xff]
          %v935 = vld [vmem:[%s447 + $0x18] sm:$0xff]
          %v936 = vld [vmem:[%s447 + $0x20] sm:$0xff]
          %v937 = vld [vmem:[%s447 + $0x28] sm:$0xff]
          %v938 = vld [vmem:[%s447 + $0x30] sm:$0xff]
          %v939 = vld [vmem:[%s447 + $0x38] sm:$0xff]
          %v940 = vld [vmem:[%s447 + $0x40] sm:$0xff]
          %v941 = vld [vmem:[%s447 + $0x48] sm:$0xff]
          %v942 = vld [vmem:[%s447 + $0x50] sm:$0xff]
          %v943 = vld [vmem:[%s447 + $0x58] sm:$0xff]
          %v944 = vld [vmem:[%s447 + $0x60] sm:$0xff]
          %v945 = vld [vmem:[%s447 + $0x68] sm:$0xff]
          %v946 = vld [vmem:[%s447 + $0x70] sm:$0xff]
          %v947 = vld [vmem:[%s447 + $0x78] sm:$0xff]
          %v948 = vld [vmem:[#allocation4] sm:$0xff]
          %v949 = vld [vmem:[#allocation4 + $0x8] sm:$0xff]
          %v950 = vld [vmem:[#allocation4 + $0x10] sm:$0xff]
          %v951 = vld [vmem:[#allocation4 + $0x18] sm:$0xff]
          %v952 = vld [vmem:[#allocation4 + $0x20] sm:$0xff]
          %v953 = vld [vmem:[#allocation4 + $0x28] sm:$0xff]
          %v954 = vld [vmem:[#allocation4 + $0x30] sm:$0xff]
          %v955 = vld [vmem:[#allocation4 + $0x38] sm:$0xff]
          %v956 = vld [vmem:[#allocation4 + $0x40] sm:$0xff]
          %v957 = vld [vmem:[#allocation4 + $0x48] sm:$0xff]
          %v958 = vld [vmem:[#allocation4 + $0x50] sm:$0xff]
          %v959 = vld [vmem:[#allocation4 + $0x58] sm:$0xff]
          %v960 = vld [vmem:[#allocation4 + $0x60] sm:$0xff]
          %v961 = vld [vmem:[#allocation4 + $0x68] sm:$0xff]
          %v962 = vld [vmem:[#allocation4 + $0x70] sm:$0xff]
          %v963 = vld [vmem:[#allocation4 + $0x78] sm:$0xff]
          %965 = vset.pattern.permute.xlu0 0
          %966 = vperm.xlu0 %965, %v932
          %v967 = vpop.permute.xlu0 %966
          %970 = vset.pattern.permute.xlu0 0
          %971 = vperm.xlu0 %970, %v933
          %v972 = vpop.permute.xlu0 %971
          %975 = vset.pattern.permute.xlu0 0
          %976 = vperm.xlu0 %975, %v934
          %v977 = vpop.permute.xlu0 %976
          %980 = vset.pattern.permute.xlu0 0
          %981 = vperm.xlu0 %980, %v935
          %v982 = vpop.permute.xlu0 %981
          %985 = vset.pattern.permute.xlu0 0
          %986 = vperm.xlu0 %985, %v936
          %v987 = vpop.permute.xlu0 %986
          %990 = vset.pattern.permute.xlu0 0
          %991 = vperm.xlu0 %990, %v937
          %v992 = vpop.permute.xlu0 %991
          %995 = vset.pattern.permute.xlu0 0
          %996 = vperm.xlu0 %995, %v938
          %v997 = vpop.permute.xlu0 %996
          %1000 = vset.pattern.permute.xlu0 0
          %1001 = vperm.xlu0 %1000, %v939
          %v1002 = vpop.permute.xlu0 %1001
          %1005 = vset.pattern.permute.xlu0 0
          %1006 = vperm.xlu0 %1005, %v940
          %v1007 = vpop.permute.xlu0 %1006
          %1010 = vset.pattern.permute.xlu0 0
          %1011 = vperm.xlu0 %1010, %v941
          %v1012 = vpop.permute.xlu0 %1011
          %1015 = vset.pattern.permute.xlu0 0
          %1016 = vperm.xlu0 %1015, %v942
          %v1017 = vpop.permute.xlu0 %1016
          %1020 = vset.pattern.permute.xlu0 0
          %1021 = vperm.xlu0 %1020, %v943
          %v1022 = vpop.permute.xlu0 %1021
          %1025 = vset.pattern.permute.xlu0 0
          %1026 = vperm.xlu0 %1025, %v944
          %v1027 = vpop.permute.xlu0 %1026
          %1030 = vset.pattern.permute.xlu0 0
          %1031 = vperm.xlu0 %1030, %v945
          %v1032 = vpop.permute.xlu0 %1031
          %1035 = vset.pattern.permute.xlu0 0
          %1036 = vperm.xlu0 %1035, %v946
          %v1037 = vpop.permute.xlu0 %1036
          %1040 = vset.pattern.permute.xlu0 0
          %1041 = vperm.xlu0 %1040, %v947
          %v1042 = vpop.permute.xlu0 %1041
          %v1044 = vmul.f32 %v967, %v948
          %v1045 = vmul.f32 %v972, %v949
          %v1046 = vmul.f32 %v977, %v950
          %v1047 = vmul.f32 %v982, %v951
          %v1048 = vmul.f32 %v987, %v952
          %v1049 = vmul.f32 %v992, %v953
          %v1050 = vmul.f32 %v997, %v954
          %v1051 = vmul.f32 %v1002, %v955
          %v1052 = vmul.f32 %v1007, %v956
          %v1053 = vmul.f32 %v1012, %v957
          %v1054 = vmul.f32 %v1017, %v958
          %v1055 = vmul.f32 %v1022, %v959
          %v1056 = vmul.f32 %v1027, %v960
          %v1057 = vmul.f32 %v1032, %v961
          %v1058 = vmul.f32 %v1037, %v962
          %v1059 = vmul.f32 %v1042, %v963
          %s1060 = smul.u32 %s25, 128
          %s1061 = scalar_lea.vmem [#allocation3], %s1060
          %v1062 = vld [vmem:[%s1061] sm:$0xff]
          %v1063 = vld [vmem:[%s1061 + $0x8] sm:$0xff]
          %v1064 = vld [vmem:[%s1061 + $0x10] sm:$0xff]
          %v1065 = vld [vmem:[%s1061 + $0x18] sm:$0xff]
          %v1066 = vld [vmem:[%s1061 + $0x20] sm:$0xff]
          %v1067 = vld [vmem:[%s1061 + $0x28] sm:$0xff]
          %v1068 = vld [vmem:[%s1061 + $0x30] sm:$0xff]
          %v1069 = vld [vmem:[%s1061 + $0x38] sm:$0xff]
          %v1070 = vld [vmem:[%s1061 + $0x40] sm:$0xff]
          %v1071 = vld [vmem:[%s1061 + $0x48] sm:$0xff]
          %v1072 = vld [vmem:[%s1061 + $0x50] sm:$0xff]
          %v1073 = vld [vmem:[%s1061 + $0x58] sm:$0xff]
          %v1074 = vld [vmem:[%s1061 + $0x60] sm:$0xff]
          %v1075 = vld [vmem:[%s1061 + $0x68] sm:$0xff]
          %v1076 = vld [vmem:[%s1061 + $0x70] sm:$0xff]
          %v1077 = vld [vmem:[%s1061 + $0x78] sm:$0xff]
          %v1078 = vadd.f32 %v1062, %v1044
          %v1079 = vadd.f32 %v1063, %v1045
          %v1080 = vadd.f32 %v1064, %v1046
          %v1081 = vadd.f32 %v1065, %v1047
          %v1082 = vadd.f32 %v1066, %v1048
          %v1083 = vadd.f32 %v1067, %v1049
          %v1084 = vadd.f32 %v1068, %v1050
          %v1085 = vadd.f32 %v1069, %v1051
          %v1086 = vadd.f32 %v1070, %v1052
          %v1087 = vadd.f32 %v1071, %v1053
          %v1088 = vadd.f32 %v1072, %v1054
          %v1089 = vadd.f32 %v1073, %v1055
          %v1090 = vadd.f32 %v1074, %v1056
          %v1091 = vadd.f32 %v1075, %v1057
          %v1092 = vadd.f32 %v1076, %v1058
          %v1093 = vadd.f32 %v1077, %v1059
          %1094 = vst [vmem:[%s1061] sm:$0xff] %v1078
          %1095 = vst [vmem:[%s1061 + $0x8] sm:$0xff] %v1079
          %1096 = vst [vmem:[%s1061 + $0x10] sm:$0xff] %v1080
          %1097 = vst [vmem:[%s1061 + $0x18] sm:$0xff] %v1081
          %1098 = vst [vmem:[%s1061 + $0x20] sm:$0xff] %v1082
          %1099 = vst [vmem:[%s1061 + $0x28] sm:$0xff] %v1083
          %1100 = vst [vmem:[%s1061 + $0x30] sm:$0xff] %v1084
          %1101 = vst [vmem:[%s1061 + $0x38] sm:$0xff] %v1085
          %1102 = vst [vmem:[%s1061 + $0x40] sm:$0xff] %v1086
          %1103 = vst [vmem:[%s1061 + $0x48] sm:$0xff] %v1087
          %1104 = vst [vmem:[%s1061 + $0x50] sm:$0xff] %v1088
          %1105 = vst [vmem:[%s1061 + $0x58] sm:$0xff] %v1089
          %1106 = vst [vmem:[%s1061 + $0x60] sm:$0xff] %v1090
          %1107 = vst [vmem:[%s1061 + $0x68] sm:$0xff] %v1091
          %1108 = vst [vmem:[%s1061 + $0x70] sm:$0xff] %v1092
          %1109 = vst [vmem:[%s1061 + $0x78] sm:$0xff] %v1093
          %s1110 = ssub.s32 1, %s703
          %s1111 = smul.u32 %s1110, 256
          %s1112 = sadd.s32 %s1111, %s1060
          %v1113 = vmul.f32 %v967, %v1044
          %v1114 = vmul.f32 %v972, %v1045
          %v1115 = vmul.f32 %v977, %v1046
          %v1116 = vmul.f32 %v982, %v1047
          %v1117 = vmul.f32 %v987, %v1048
          %v1118 = vmul.f32 %v992, %v1049
          %v1119 = vmul.f32 %v997, %v1050
          %v1120 = vmul.f32 %v1002, %v1051
          %v1121 = vmul.f32 %v1007, %v1052
          %v1122 = vmul.f32 %v1012, %v1053
          %v1123 = vmul.f32 %v1017, %v1054
          %v1124 = vmul.f32 %v1022, %v1055
          %v1125 = vmul.f32 %v1027, %v1056
          %v1126 = vmul.f32 %v1032, %v1057
          %v1127 = vmul.f32 %v1037, %v1058
          %v1128 = vmul.f32 %v1042, %v1059
          %v1129 = vpack.c.bf16 %v1114, %v1113
          %v1130 = vpack.c.bf16 %v1116, %v1115
          %v1131 = vpack.c.bf16 %v1118, %v1117
          %v1132 = vpack.c.bf16 %v1120, %v1119
          %v1133 = vpack.c.bf16 %v1122, %v1121
          %v1134 = vpack.c.bf16 %v1124, %v1123
          %v1135 = vpack.c.bf16 %v1126, %v1125
          %v1136 = vpack.c.bf16 %v1128, %v1127
          %s1137 = sshra.s32 %s1112, 4
          %s1138 = sand.u32 %s1112, 15
          %s1139 = smul.addr %s1137, 8
          %s1140 = scalar_lea.vmem [#allocation2], %s1139
          %1141 = vst [vmem:[%s1140] sm:$0xff] %v1129
          %1142 = vst [vmem:[%s1140 + $0x8] sm:$0xff] %v1130
          %1143 = vst [vmem:[%s1140 + $0x10] sm:$0xff] %v1131
          %1144 = vst [vmem:[%s1140 + $0x18] sm:$0xff] %v1132
          %1145 = vst [vmem:[%s1140 + $0x20] sm:$0xff] %v1133
          %1146 = vst [vmem:[%s1140 + $0x28] sm:$0xff] %v1134
          %1147 = vst [vmem:[%s1140 + $0x30] sm:$0xff] %v1135
          %1148 = vst [vmem:[%s1140 + $0x38] sm:$0xff] %v1136
          %p1149 = scmp.eq.s32.totalorder %s24, 2
          // Predicated region
          $region106: #{grand_forward.1} parent=104 // pred_check
            %p1150 = pneg %p1149
          $region107: #{grand_forward.1} parent=104 // pred_check_branch
            %1152 = sbr.rel (%p1150) target = $region109
          $region108: #{grand_forward.1} parent=104 // pred_region
            %v1153 = vld [vmem:[%s1061] sm:$0xff]
            %v1154 = vld [vmem:[%s1061 + $0x8] sm:$0xff]
            %v1155 = vld [vmem:[%s1061 + $0x10] sm:$0xff]
            %v1156 = vld [vmem:[%s1061 + $0x18] sm:$0xff]
            %v1157 = vld [vmem:[%s1061 + $0x20] sm:$0xff]
            %v1158 = vld [vmem:[%s1061 + $0x28] sm:$0xff]
            %v1159 = vld [vmem:[%s1061 + $0x30] sm:$0xff]
            %v1160 = vld [vmem:[%s1061 + $0x38] sm:$0xff]
            %v1161 = vld [vmem:[%s1061 + $0x40] sm:$0xff]
            %v1162 = vld [vmem:[%s1061 + $0x48] sm:$0xff]
            %v1163 = vld [vmem:[%s1061 + $0x50] sm:$0xff]
            %v1164 = vld [vmem:[%s1061 + $0x58] sm:$0xff]
            %v1165 = vld [vmem:[%s1061 + $0x60] sm:$0xff]
            %v1166 = vld [vmem:[%s1061 + $0x68] sm:$0xff]
            %v1167 = vld [vmem:[%s1061 + $0x70] sm:$0xff]
            %v1168 = vld [vmem:[%s1061 + $0x78] sm:$0xff]
            %v1169 = vmul.f32 %v1153, 0.25
            %v1170 = vmul.f32 %v1154, 0.25
            %v1171 = vmul.f32 %v1155, 0.25
            %v1172 = vmul.f32 %v1156, 0.25
            %v1173 = vmul.f32 %v1157, 0.25
            %v1174 = vmul.f32 %v1158, 0.25
            %v1175 = vmul.f32 %v1159, 0.25
            %v1176 = vmul.f32 %v1160, 0.25
            %v1177 = vmul.f32 %v1161, 0.25
            %v1178 = vmul.f32 %v1162, 0.25
            %v1179 = vmul.f32 %v1163, 0.25
            %v1180 = vmul.f32 %v1164, 0.25
            %v1181 = vmul.f32 %v1165, 0.25
            %v1182 = vmul.f32 %v1166, 0.25
            %v1183 = vmul.f32 %v1167, 0.25
            %v1184 = vmul.f32 %v1168, 0.25
            %v1185 = vld [vmem:[%s4] sm:$0xff]
            %v1186 = vld [vmem:[%s4 + $0x8] sm:$0xff]
            %v1187 = vld [vmem:[%s4 + $0x10] sm:$0xff]
            %v1188 = vld [vmem:[%s4 + $0x18] sm:$0xff]
            %v1189 = vld [vmem:[%s4 + $0x20] sm:$0xff]
            %v1190 = vld [vmem:[%s4 + $0x28] sm:$0xff]
            %v1191 = vld [vmem:[%s4 + $0x30] sm:$0xff]
            %v1192 = vld [vmem:[%s4 + $0x38] sm:$0xff]
            %v1193 = vld [vmem:[%s4 + $0x40] sm:$0xff]
            %v1194 = vld [vmem:[%s4 + $0x48] sm:$0xff]
            %v1195 = vld [vmem:[%s4 + $0x50] sm:$0xff]
            %v1196 = vld [vmem:[%s4 + $0x58] sm:$0xff]
            %v1197 = vld [vmem:[%s4 + $0x60] sm:$0xff]
            %v1198 = vld [vmem:[%s4 + $0x68] sm:$0xff]
            %v1199 = vld [vmem:[%s4 + $0x70] sm:$0xff]
            %v1200 = vld [vmem:[%s4 + $0x78] sm:$0xff]
            %v1201 = vld [vmem:[%s5] sm:$0x1]
            %v1203 = vlaneseq
            %v1204 = vshrl.u32 %v1203, 7
            %v1205 = vsub.s32 0, %v1204
            %v1206 = vrot.slane %v1201, %v1205
            %1208 = vmatprep.subr.mxu0 0.0
            %1209 = vmatpush1.msra.mxu0 %v1185
            %1210 = vmatprep.subr.mxu0 0.0
            %1211 = vmatpush1.msra.mxu0 %v1186
            %1212 = vmatprep.subr.mxu0 0.0
            %1213 = vmatpush1.msra.mxu0 %v1187
            %1214 = vmatprep.subr.mxu0 0.0
            %1215 = vmatpush1.msra.mxu0 %v1188
            %1216 = vmatprep.subr.mxu0 0.0
            %1217 = vmatpush1.msra.mxu0 %v1189
            %1218 = vmatprep.subr.mxu0 0.0
            %1219 = vmatpush1.msra.mxu0 %v1190
            %1220 = vmatprep.subr.mxu0 0.0
            %1221 = vmatpush1.msra.mxu0 %v1191
            %1222 = vmatprep.subr.mxu0 0.0
            %1223 = vmatpush1.msra.mxu0 %v1192
            %1224 = vmatprep.subr.mxu0 0.0
            %1225 = vmatpush1.msra.mxu0 %v1193
            %1226 = vmatprep.subr.mxu0 0.0
            %1227 = vmatpush1.msra.mxu0 %v1194
            %1228 = vmatprep.subr.mxu0 0.0
            %1229 = vmatpush1.msra.mxu0 %v1195
            %1230 = vmatprep.subr.mxu0 0.0
            %1231 = vmatpush1.msra.mxu0 %v1196
            %1232 = vmatprep.subr.mxu0 0.0
            %1233 = vmatpush1.msra.mxu0 %v1197
            %1234 = vmatprep.subr.mxu0 0.0
            %1235 = vmatpush1.msra.mxu0 %v1198
            %1236 = vmatprep.subr.mxu0 0.0
            %1237 = vmatpush1.msra.mxu0 %v1199
            %1238 = vmatprep.subr.mxu0 0.0
            %1239 = vmatpush1.msra.mxu0 %v1200
            %1240 = vmatprep.subr.mxu0 0.0
            %1241 = vmatpush1.msra.mxu0 0.0
            %1242 = vmatprep.subr.mxu0 0.0
            %1243 = vmatpush1.msra.mxu0 0.0
            %1244 = vmatprep.subr.mxu0 0.0
            %1245 = vmatpush1.msra.mxu0 0.0
            %1246 = vmatprep.subr.mxu0 0.0
            %1247 = vmatpush1.msra.mxu0 0.0
            %1248 = vmatprep.subr.mxu0 0.0
            %1249 = vmatpush1.msra.mxu0 0.0
            %1250 = vmatprep.subr.mxu0 0.0
            %1251 = vmatpush1.msra.mxu0 0.0
            %1252 = vmatprep.subr.mxu0 0.0
            %1253 = vmatpush1.msra.mxu0 0.0
            %1254 = vmatprep.subr.mxu0 0.0
            %1255 = vmatpush1.msra.mxu0 0.0
            %1256 = vmatprep.subr.mxu0 0.0
            %1257 = vmatpush1.msra.mxu0 0.0
            %1258 = vmatprep.subr.mxu0 0.0
            %1259 = vmatpush1.msra.mxu0 0.0
            %1260 = vmatprep.subr.mxu0 0.0
            %1261 = vmatpush1.msra.mxu0 0.0
            %1262 = vmatprep.subr.mxu0 0.0
            %1263 = vmatpush1.msra.mxu0 0.0
            %1264 = vmatprep.subr.mxu0 0.0
            %1265 = vmatpush1.msra.mxu0 0.0
            %1266 = vmatprep.subr.mxu0 0.0
            %1267 = vmatpush1.msra.mxu0 0.0
            %1268 = vmatprep.subr.mxu0 0.0
            %1269 = vmatpush1.msra.mxu0 0.0
            %1270 = vmatprep.subr.mxu0 0.0
            %1271 = vmatpush1.msra.mxu0 0.0
            %1272 = vmatprep.mubr.f32.mxu0 0.0
            %1273 = vmatmul.mubr.f32.gmra.mrb[0].mxu0 %v1169
            %v1274 = vpop.f32.mrb[0].mxu0
            %v1275 = vadd.f32 %v1206, %v1274
            %v1276 = vpop.f32.mrb[0].mxu0
            %1277 = vmatprep.mubr.f32.mxu0 0.0
            %1278 = vmatmul.mubr.f32.gmra.mrb[0].mxu0 %v1170
            %v1279 = vpop.f32.mrb[0].mxu0
            %v1280 = vadd.f32 %v1206, %v1279
            %v1281 = vpop.f32.mrb[0].mxu0
            %1282 = vmatprep.mubr.f32.mxu0 0.0
            %1283 = vmatmul.mubr.f32.gmra.mrb[0].mxu0 %v1171
            %v1284 = vpop.f32.mrb[0].mxu0
            %v1285 = vadd.f32 %v1206, %v1284
            %v1286 = vpop.f32.mrb[0].mxu0
            %1287 = vmatprep.mubr.f32.mxu0 0.0
            %1288 = vmatmul.mubr.f32.gmra.mrb[0].mxu0 %v1172
            %v1289 = vpop.f32.mrb[0].mxu0
            %v1290 = vadd.f32 %v1206, %v1289
            %v1291 = vpop.f32.mrb[0].mxu0
            %1292 = vmatprep.mubr.f32.mxu0 0.0
            %1293 = vmatmul.mubr.f32.gmra.mrb[0].mxu0 %v1173
            %v1294 = vpop.f32.mrb[0].mxu0
            %v1295 = vadd.f32 %v1206, %v1294
            %v1296 = vpop.f32.mrb[0].mxu0
            %1297 = vmatprep.mubr.f32.mxu0 0.0
            %1298 = vmatmul.mubr.f32.gmra.mrb[0].mxu0 %v1174
            %v1299 = vpop.f32.mrb[0].mxu0
            %v1300 = vadd.f32 %v1206, %v1299
            %v1301 = vpop.f32.mrb[0].mxu0
            %1302 = vmatprep.mubr.f32.mxu0 0.0
            %1303 = vmatmul.mubr.f32.gmra.mrb[0].mxu0 %v1175
            %v1304 = vpop.f32.mrb[0].mxu0
            %v1305 = vadd.f32 %v1206, %v1304
            %v1306 = vpop.f32.mrb[0].mxu0
            %1307 = vmatprep.mubr.f32.mxu0 0.0
            %1308 = vmatmul.mubr.f32.gmra.mrb[0].mxu0 %v1176
            %v1309 = vpop.f32.mrb[0].mxu0
            %v1310 = vadd.f32 %v1206, %v1309
            %v1311 = vpop.f32.mrb[0].mxu0
            %1312 = vmatprep.mubr.f32.mxu0 0.0
            %1313 = vmatmul.mubr.f32.gmra.mrb[0].mxu0 %v1177
            %v1314 = vpop.f32.mrb[0].mxu0
            %v1315 = vadd.f32 %v1206, %v1314
            %v1316 = vpop.f32.mrb[0].mxu0
            %1317 = vmatprep.mubr.f32.mxu0 0.0
            %1318 = vmatmul.mubr.f32.gmra.mrb[0].mxu0 %v1178
            %v1319 = vpop.f32.mrb[0].mxu0
            %v1320 = vadd.f32 %v1206, %v1319
            %v1321 = vpop.f32.mrb[0].mxu0
            %1322 = vmatprep.mubr.f32.mxu0 0.0
            %1323 = vmatmul.mubr.f32.gmra.mrb[0].mxu0 %v1179
            %v1324 = vpop.f32.mrb[0].mxu0
            %v1325 = vadd.f32 %v1206, %v1324
            %v1326 = vpop.f32.mrb[0].mxu0
            %1327 = vmatprep.mubr.f32.mxu0 0.0
            %1328 = vmatmul.mubr.f32.gmra.mrb[0].mxu0 %v1180
            %v1329 = vpop.f32.mrb[0].mxu0
            %v1330 = vadd.f32 %v1206, %v1329
            %v1331 = vpop.f32.mrb[0].mxu0
            %1332 = vmatprep.mubr.f32.mxu0 0.0
            %1333 = vmatmul.mubr.f32.gmra.mrb[0].mxu0 %v1181
            %v1334 = vpop.f32.mrb[0].mxu0
            %v1335 = vadd.f32 %v1206, %v1334
            %v1336 = vpop.f32.mrb[0].mxu0
            %1337 = vmatprep.mubr.f32.mxu0 0.0
            %1338 = vmatmul.mubr.f32.gmra.mrb[0].mxu0 %v1182
            %v1339 = vpop.f32.mrb[0].mxu0
            %v1340 = vadd.f32 %v1206, %v1339
            %v1341 = vpop.f32.mrb[0].mxu0
            %1342 = vmatprep.mubr.f32.mxu0 0.0
            %1343 = vmatmul.mubr.f32.gmra.mrb[0].mxu0 %v1183
            %v1344 = vpop.f32.mrb[0].mxu0
            %v1345 = vadd.f32 %v1206, %v1344
            %v1346 = vpop.f32.mrb[0].mxu0
            %1347 = vmatprep.mubr.f32.mxu0 0.0
            %1348 = vmatmul.mubr.f32.gmra.mrb[0].mxu0 %v1184
            %v1349 = vpop.f32.mrb[0].mxu0
            %v1350 = vadd.f32 %v1206, %v1349
            %v1351 = vpop.f32.mrb[0].mxu0
            %1352 = vdwg.mxu0
            %v1353 = vmax.f32 %v1275, 0.0
            %v1354 = vmax.f32 %v1280, 0.0
            %v1355 = vmax.f32 %v1285, 0.0
            %v1356 = vmax.f32 %v1290, 0.0
            %v1357 = vmax.f32 %v1295, 0.0
            %v1358 = vmax.f32 %v1300, 0.0
            %v1359 = vmax.f32 %v1305, 0.0
            %v1360 = vmax.f32 %v1310, 0.0
            %v1361 = vmax.f32 %v1315, 0.0
            %v1362 = vmax.f32 %v1320, 0.0
            %v1363 = vmax.f32 %v1325, 0.0
            %v1364 = vmax.f32 %v1330, 0.0
            %v1365 = vmax.f32 %v1335, 0.0
            %v1366 = vmax.f32 %v1340, 0.0
            %v1367 = vmax.f32 %v1345, 0.0
            %v1368 = vmax.f32 %v1350, 0.0
            %v1369 = vld [vmem:[%s6] sm:$0xff]
            %v1370 = vld [vmem:[%s6 + $0x8] sm:$0xff]
            %v1371 = vld [vmem:[%s6 + $0x10] sm:$0xff]
            %v1372 = vld [vmem:[%s6 + $0x18] sm:$0xff]
            %v1373 = vld [vmem:[%s6 + $0x20] sm:$0xff]
            %v1374 = vld [vmem:[%s6 + $0x28] sm:$0xff]
            %v1375 = vld [vmem:[%s6 + $0x30] sm:$0xff]
            %v1376 = vld [vmem:[%s6 + $0x38] sm:$0xff]
            %v1377 = vld [vmem:[%s6 + $0x40] sm:$0xff]
            %v1378 = vld [vmem:[%s6 + $0x48] sm:$0xff]
            %v1379 = vld [vmem:[%s6 + $0x50] sm:$0xff]
            %v1380 = vld [vmem:[%s6 + $0x58] sm:$0xff]
            %v1381 = vld [vmem:[%s6 + $0x60] sm:$0xff]
            %v1382 = vld [vmem:[%s6 + $0x68] sm:$0xff]
            %v1383 = vld [vmem:[%s6 + $0x70] sm:$0xff]
            %v1384 = vld [vmem:[%s6 + $0x78] sm:$0xff]
            %v1385 = vld [vmem:[%s7] sm:$0x1]
            %v1387 = vlaneseq
            %v1388 = vshrl.u32 %v1387, 7
            %v1389 = vsub.s32 0, %v1388
            %v1390 = vrot.slane %v1385, %v1389
            %1392 = vmatprep.subr.mxu0 0.0
            %1393 = vmatpush1.msra.mxu0 %v1369
            %1394 = vmatprep.subr.mxu0 0.0
            %1395 = vmatpush1.msra.mxu0 %v1370
            %1396 = vmatprep.subr.mxu0 0.0
            %1397 = vmatpush1.msra.mxu0 %v1371
            %1398 = vmatprep.subr.mxu0 0.0
            %1399 = vmatpush1.msra.mxu0 %v1372
            %1400 = vmatprep.subr.mxu0 0.0
            %1401 = vmatpush1.msra.mxu0 %v1373
            %1402 = vmatprep.subr.mxu0 0.0
            %1403 = vmatpush1.msra.mxu0 %v1374
            %1404 = vmatprep.subr.mxu0 0.0
            %1405 = vmatpush1.msra.mxu0 %v1375
            %1406 = vmatprep.subr.mxu0 0.0
            %1407 = vmatpush1.msra.mxu0 %v1376
            %1408 = vmatprep.subr.mxu0 0.0
            %1409 = vmatpush1.msra.mxu0 %v1377
            %1410 = vmatprep.subr.mxu0 0.0
            %1411 = vmatpush1.msra.mxu0 %v1378
            %1412 = vmatprep.subr.mxu0 0.0
            %1413 = vmatpush1.msra.mxu0 %v1379
            %1414 = vmatprep.subr.mxu0 0.0
            %1415 = vmatpush1.msra.mxu0 %v1380
            %1416 = vmatprep.subr.mxu0 0.0
            %1417 = vmatpush1.msra.mxu0 %v1381
            %1418 = vmatprep.subr.mxu0 0.0
            %1419 = vmatpush1.msra.mxu0 %v1382
            %1420 = vmatprep.subr.mxu0 0.0
            %1421 = vmatpush1.msra.mxu0 %v1383
            %1422 = vmatprep.subr.mxu0 0.0
            %1423 = vmatpush1.msra.mxu0 %v1384
            %1424 = vmatprep.subr.mxu0 0.0
            %1425 = vmatpush1.msra.mxu0 0.0
            %1426 = vmatprep.subr.mxu0 0.0
            %1427 = vmatpush1.msra.mxu0 0.0
            %1428 = vmatprep.subr.mxu0 0.0
            %1429 = vmatpush1.msra.mxu0 0.0
            %1430 = vmatprep.subr.mxu0 0.0
            %1431 = vmatpush1.msra.mxu0 0.0
            %1432 = vmatprep.subr.mxu0 0.0
            %1433 = vmatpush1.msra.mxu0 0.0
            %1434 = vmatprep.subr.mxu0 0.0
            %1435 = vmatpush1.msra.mxu0 0.0
            %1436 = vmatprep.subr.mxu0 0.0
            %1437 = vmatpush1.msra.mxu0 0.0
            %1438 = vmatprep.subr.mxu0 0.0
            %1439 = vmatpush1.msra.mxu0 0.0
            %1440 = vmatprep.subr.mxu0 0.0
            %1441 = vmatpush1.msra.mxu0 0.0
            %1442 = vmatprep.subr.mxu0 0.0
            %1443 = vmatpush1.msra.mxu0 0.0
            %1444 = vmatprep.subr.mxu0 0.0
            %1445 = vmatpush1.msra.mxu0 0.0
            %1446 = vmatprep.subr.mxu0 0.0
            %1447 = vmatpush1.msra.mxu0 0.0
            %1448 = vmatprep.subr.mxu0 0.0
            %1449 = vmatpush1.msra.mxu0 0.0
            %1450 = vmatprep.subr.mxu0 0.0
            %1451 = vmatpush1.msra.mxu0 0.0
            %1452 = vmatprep.subr.mxu0 0.0
            %1453 = vmatpush1.msra.mxu0 0.0
            %1454 = vmatprep.subr.mxu0 0.0
            %1455 = vmatpush1.msra.mxu0 0.0
            %1456 = vmatprep.mubr.f32.mxu0 0.0
            %1457 = vmatmul.mubr.f32.gmra.mrb[0].mxu0 %v1353
            %v1458 = vpop.f32.mrb[0].mxu0
            %v1459 = vadd.f32 %v1390, %v1458
            %v1460 = vpop.f32.mrb[0].mxu0
            %1461 = vmatprep.mubr.f32.mxu0 0.0
            %1462 = vmatmul.mubr.f32.gmra.mrb[0].mxu0 %v1354
            %v1463 = vpop.f32.mrb[0].mxu0
            %v1464 = vadd.f32 %v1390, %v1463
            %v1465 = vpop.f32.mrb[0].mxu0
            %1466 = vmatprep.mubr.f32.mxu0 0.0
            %1467 = vmatmul.mubr.f32.gmra.mrb[0].mxu0 %v1355
            %v1468 = vpop.f32.mrb[0].mxu0
            %v1469 = vadd.f32 %v1390, %v1468
            %v1470 = vpop.f32.mrb[0].mxu0
            %1471 = vmatprep.mubr.f32.mxu0 0.0
            %1472 = vmatmul.mubr.f32.gmra.mrb[0].mxu0 %v1356
            %v1473 = vpop.f32.mrb[0].mxu0
            %v1474 = vadd.f32 %v1390, %v1473
            %v1475 = vpop.f32.mrb[0].mxu0
            %1476 = vmatprep.mubr.f32.mxu0 0.0
            %1477 = vmatmul.mubr.f32.gmra.mrb[0].mxu0 %v1357
            %v1478 = vpop.f32.mrb[0].mxu0
            %v1479 = vadd.f32 %v1390, %v1478
            %v1480 = vpop.f32.mrb[0].mxu0
            %1481 = vmatprep.mubr.f32.mxu0 0.0
            %1482 = vmatmul.mubr.f32.gmra.mrb[0].mxu0 %v1358
            %v1483 = vpop.f32.mrb[0].mxu0
            %v1484 = vadd.f32 %v1390, %v1483
            %v1485 = vpop.f32.mrb[0].mxu0
            %1486 = vmatprep.mubr.f32.mxu0 0.0
            %1487 = vmatmul.mubr.f32.gmra.mrb[0].mxu0 %v1359
            %v1488 = vpop.f32.mrb[0].mxu0
            %v1489 = vadd.f32 %v1390, %v1488
            %v1490 = vpop.f32.mrb[0].mxu0
            %1491 = vmatprep.mubr.f32.mxu0 0.0
            %1492 = vmatmul.mubr.f32.gmra.mrb[0].mxu0 %v1360
            %v1493 = vpop.f32.mrb[0].mxu0
            %v1494 = vadd.f32 %v1390, %v1493
            %v1495 = vpop.f32.mrb[0].mxu0
            %1496 = vmatprep.mubr.f32.mxu0 0.0
            %1497 = vmatmul.mubr.f32.gmra.mrb[0].mxu0 %v1361
            %v1498 = vpop.f32.mrb[0].mxu0
            %v1499 = vadd.f32 %v1390, %v1498
            %v1500 = vpop.f32.mrb[0].mxu0
            %1501 = vmatprep.mubr.f32.mxu0 0.0
            %1502 = vmatmul.mubr.f32.gmra.mrb[0].mxu0 %v1362
            %v1503 = vpop.f32.mrb[0].mxu0
            %v1504 = vadd.f32 %v1390, %v1503
            %v1505 = vpop.f32.mrb[0].mxu0
            %1506 = vmatprep.mubr.f32.mxu0 0.0
            %1507 = vmatmul.mubr.f32.gmra.mrb[0].mxu0 %v1363
            %v1508 = vpop.f32.mrb[0].mxu0
            %v1509 = vadd.f32 %v1390, %v1508
            %v1510 = vpop.f32.mrb[0].mxu0
            %1511 = vmatprep.mubr.f32.mxu0 0.0
            %1512 = vmatmul.mubr.f32.gmra.mrb[0].mxu0 %v1364
            %v1513 = vpop.f32.mrb[0].mxu0
            %v1514 = vadd.f32 %v1390, %v1513
            %v1515 = vpop.f32.mrb[0].mxu0
            %1516 = vmatprep.mubr.f32.mxu0 0.0
            %1517 = vmatmul.mubr.f32.gmra.mrb[0].mxu0 %v1365
            %v1518 = vpop.f32.mrb[0].mxu0
            %v1519 = vadd.f32 %v1390, %v1518
            %v1520 = vpop.f32.mrb[0].mxu0
            %1521 = vmatprep.mubr.f32.mxu0 0.0
            %1522 = vmatmul.mubr.f32.gmra.mrb[0].mxu0 %v1366
            %v1523 = vpop.f32.mrb[0].mxu0
            %v1524 = vadd.f32 %v1390, %v1523
            %v1525 = vpop.f32.mrb[0].mxu0
            %1526 = vmatprep.mubr.f32.mxu0 0.0
            %1527 = vmatmul.mubr.f32.gmra.mrb[0].mxu0 %v1367
            %v1528 = vpop.f32.mrb[0].mxu0
            %v1529 = vadd.f32 %v1390, %v1528
            %v1530 = vpop.f32.mrb[0].mxu0
            %1531 = vmatprep.mubr.f32.mxu0 0.0
            %1532 = vmatmul.mubr.f32.gmra.mrb[0].mxu0 %v1368
            %v1533 = vpop.f32.mrb[0].mxu0
            %v1534 = vadd.f32 %v1390, %v1533
            %v1535 = vpop.f32.mrb[0].mxu0
            %1536 = vdwg.mxu0
            %1537 = vst [vmem:[%s453] sm:$0xff] %v1459
            %1538 = vst [vmem:[%s453 + $0x8] sm:$0xff] %v1464
            %1539 = vst [vmem:[%s453 + $0x10] sm:$0xff] %v1469
            %1540 = vst [vmem:[%s453 + $0x18] sm:$0xff] %v1474
            %1541 = vst [vmem:[%s453 + $0x20] sm:$0xff] %v1479
            %1542 = vst [vmem:[%s453 + $0x28] sm:$0xff] %v1484
            %1543 = vst [vmem:[%s453 + $0x30] sm:$0xff] %v1489
            %1544 = vst [vmem:[%s453 + $0x38] sm:$0xff] %v1494
            %1545 = vst [vmem:[%s453 + $0x40] sm:$0xff] %v1499
            %1546 = vst [vmem:[%s453 + $0x48] sm:$0xff] %v1504
            %1547 = vst [vmem:[%s453 + $0x50] sm:$0xff] %v1509
            %1548 = vst [vmem:[%s453 + $0x58] sm:$0xff] %v1514
            %1549 = vst [vmem:[%s453 + $0x60] sm:$0xff] %v1519
            %1550 = vst [vmem:[%s453 + $0x68] sm:$0xff] %v1524
            %1551 = vst [vmem:[%s453 + $0x70] sm:$0xff] %v1529
            %1552 = vst [vmem:[%s453 + $0x78] sm:$0xff] %v1534
          $region109: #{grand_forward.1} parent=104 // pred_fallthru
            _
        $region105: #{grand_forward.1} parent=88 // pred_fallthru
          _
        %s1553 = smul.u32 16, %s25
        %p1554 = scmp.lt.s32.totalorder %s1553, 31
        %s1555 = scalar_select %p1554, %s1553, 31
        %s1556 = smul.addr %s1555, 8
        %s1557 = scalar_lea.vmem %s8, %s1556
        // Predicated region
        $region110: #{grand_forward.1} parent=88 // pred_check
          %p1558 = pneg %p236
        $region111: #{grand_forward.1} parent=88 // pred_check_branch
          %1560 = sbr.rel (%p1558) target = $region113
        $region112: #{grand_forward.1} parent=88 // pred_region
          %s1561 = smul.u32 16, %s25
        $region113: #{grand_forward.1} parent=88 // pred_fallthru
          _
      $region89: #{grand_forward.1} parent=5 // pred_fallthru
        _
      %p1562 = scmp.le.s32.totalorder 2, %s14
      // Predicated region
      $region114: #{grand_forward.1} parent=5 // pred_check
        %p1563 = pneg %p1562
      $region115: #{grand_forward.1} parent=5 // pred_check_branch
        %1565 = sbr.rel (%p1563) target = $region117
      $region116: #{grand_forward.1} parent=5 // pred_region
        %s1566 = ssub.s32 %s14, 2
        // Predicated region
        $region118: #{grand_forward.1} parent=116 // pred_check
          %p1567 = pneg %p242
        $region119: #{grand_forward.1} parent=116 // pred_check_branch
          %1569 = sbr.rel (%p1567) target = $region121
        $region120: #{grand_forward.1} parent=116 // pred_region
          %s1570 = smul.u32 16, %s28
          %p1571 = scmp.lt.s32.totalorder %s1570, 31
          %s1572 = scalar_select %p1571, %s1570, 31
          %s1573 = smul.addr %s1572, 8
          %s1574 = scalar_lea.vmem %s8, %s1573
        $region121: #{grand_forward.1} parent=116 // pred_fallthru
          _
      $region117: #{grand_forward.1} parent=5 // pred_fallthru
        _
    $region6: #{grand_forward.1} parent=1 // loop_footer
      %s18 = sadd.s32 1, %s14
    $region7: #{grand_forward.1} parent=1 // loop_footer_branch
      %13 = sbr.rel target = $region3
    $region8: #{grand_forward.1} parent=1 // loop_exit
      _

</llo_original>
